<compile_context>
chip_gen: v6e
topology: v6e:2x2x1
jax: 0.10.0
libtpu: 0.0.40
codegen_flags: <defaults>
</compile_context>

<pallas_src>
import functools

import jax
import jax.numpy as jnp
from jax import lax
from jax.experimental import pallas as pl
from jax.experimental.pallas import tpu as pltpu

LANE = 128      # lane width  (last dim)
SUBLANE = 8     # sublane width (second-to-last dim)


def _round_up(n, m):
    return ((n + m - 1) // m) * m


def _wavenet_kernel(x_ref,
                    wfg0_ref, wfg1_ref, bfg_ref,
                    wsr_ref, bsr_ref,
                    o_ref,
                    *, num_layers, cp, compute_dtype):
    """Processes one batch element.

    x_ref:  (1, Tp, Cp) f32 in VMEM          (residual stream input)
    wfg0/1: (L, Cp, 2Cp) bf16                [filter | gate] taps (0=past, 1=now)
    bfg:    (L, 1, 2Cp)  f32
    wsr:    (L, Cp, 2Cp) bf16                [skip | res] 1x1 convs
    bsr:    (L, 1, 2Cp)  f32
    o_ref:  (1, Tp, Cp)  f32                 relu(sum of skips)
    """
    x = x_ref[0]                                    # (Tp, Cp) f32
    tp = x.shape[0]
    skip_sum = jnp.zeros((tp, cp), jnp.float32)

    # Loop-invariant helpers (hoisted: JAX does not CSE broadcasts in loops).
    row = lax.broadcasted_iota(jnp.int32, (tp, cp), 0)        # time index per row
    col = lax.broadcasted_iota(jnp.int32, (1, 2 * cp), 1)
    # sigmoid(g) = 0.5 * tanh(0.5 * g) + 0.5  -> scale the gate half by 0.5 and
    # run a single tanh pass over the concatenated [f | g] tile.
    pre_scale = jnp.where(col < cp, 1.0, 0.5).astype(jnp.float32)

    for l in range(num_layers):                     # small static layer loop
        d = 2 ** l                                  # dilation

        if d >= tp:
            # Dilated tap always reads left zero-padding.
            x_shift = jnp.zeros_like(x)
        else:
            # Causal shift: x_shift[t] = x[t - d], zeros for t < d.
            # roll uses the XLU slot; mask is one vselect (no VMEM copy).
            x_shift = jnp.where(row >= d, pltpu.roll(x, d, 0), 0.0)

        x_bf = x.astype(compute_dtype)
        xs_bf = x_shift.astype(compute_dtype)

        # Fused filter+gate pre-activation: (Tp, 2Cp), f32 accumulation.
        fg = (jnp.dot(x_bf, wfg1_ref[l], preferred_element_type=jnp.float32)
              + jnp.dot(xs_bf, wfg0_ref[l], preferred_element_type=jnp.float32)
              + bfg_ref[l])

        a = jnp.tanh(fg * pre_scale)                            # single EUP pass
        gated = a[:, :cp] * (a[:, cp:] * 0.5 + 0.5)             # tanh(f)*sigmoid(g)

        # Fused skip+res 1x1 convs: (Tp, 2Cp), f32 accumulation.
        sr = (jnp.dot(gated.astype(compute_dtype), wsr_ref[l],
                      preferred_element_type=jnp.float32)
              + bsr_ref[l])

        skip_sum = skip_sum + sr[:, :cp]
        x = sr[:, cp:] + x                                      # residual update

    o_ref[0] = jnp.maximum(skip_sum, 0.0)                       # ReLU


def _pack_params(params, C, Cp, compute_dtype):
    """Zero-pad channels to Cp and fuse [filter|gate] and [skip|res] weights."""
    (wf0, wf1, bf, wg0, wg1, bg, wres, bres, wskip, bskip) = params
    L = wf0.shape[0]

    def pad_w(w):   # (L, C, C) -> (L, Cp, Cp)
        return jnp.zeros((L, Cp, Cp), jnp.float32).at[:, :C, :C].set(w)

    def pad_b(b):   # (L, 1, C) -> (L, 1, Cp)
        return jnp.zeros((L, 1, Cp), jnp.float32).at[:, :, :C].set(b)

    wfg0 = jnp.concatenate([pad_w(wf0), pad_w(wg0)], axis=2).astype(compute_dtype)
    wfg1 = jnp.concatenate([pad_w(wf1), pad_w(wg1)], axis=2).astype(compute_dtype)
    bfg = jnp.concatenate([pad_b(bf), pad_b(bg)], axis=2)            # f32
    wsr = jnp.concatenate([pad_w(wskip), pad_w(wres)], axis=2).astype(compute_dtype)
    bsr = jnp.concatenate([pad_b(bskip), pad_b(bres)], axis=2)       # f32
    return wfg0, wfg1, bfg, wsr, bsr


def wavenet_temporal(x_nct, params, *, num_layers, compute_dtype=jnp.bfloat16):
    """x_nct: (B, C, T) float32 (PyTorch Conv1d layout).  Returns (B, C, T)."""
    B, C, T = x_nct.shape
    L = num_layers
    Cp = _round_up(max(C, 1), LANE)        # lane-dense channel axis
    Tp = _round_up(max(T, 1), SUBLANE)

    # NCT -> BTC, zero-padded to (Tp, Cp).  Keeping BTC end-to-end in the
    # surrounding model would remove these two HBM transpose passes.
    x_btc = jnp.transpose(x_nct, (0, 2, 1)).astype(jnp.float32)
    x_p = jnp.zeros((B, Tp, Cp), jnp.float32).at[:, :T, :C].set(x_btc)

    wfg0, wfg1, bfg, wsr, bsr = _pack_params(params, C, Cp, compute_dtype)

    kernel = functools.partial(_wavenet_kernel, num_layers=L, cp=Cp,
                               compute_dtype=compute_dtype)

    full3 = lambda shape: pl.BlockSpec(shape, lambda b: (0, 0, 0))

    # Size the scoped VMEM budget explicitly (v7x default is 32 MiB of 64 MiB).
    itemsize = jnp.dtype(compute_dtype).itemsize
    weight_bytes = 2 * (wfg0.size + wfg1.size + wsr.size) * itemsize \
        + 2 * (bfg.size + bsr.size) * 4
    act_bytes = 2 * 2 * Tp * Cp * 4          # double-buffered x in / out blocks
    live_bytes = 10 * Tp * Cp * 4            # fg, gated, shift, skip_sum, x, ...
    vmem_limit = min(64 * 1024 * 1024,
                     max(32 * 1024 * 1024,
                         int(1.5 * (weight_bytes + act_bytes + live_bytes))))

    out_p = pl.pallas_call(
        kernel,
        out_shape=jax.ShapeDtypeStruct((B, Tp, Cp), jnp.float32),
        grid_spec=pltpu.PrefetchScalarGridSpec(
            num_scalar_prefetch=0,
            grid=(B,),
            in_specs=[
                pl.BlockSpec((1, Tp, Cp), lambda b: (b, 0, 0)),   # x
                full3((L, Cp, 2 * Cp)),                           # wfg0 (past tap)
                full3((L, Cp, 2 * Cp)),                           # wfg1 (current tap)
                full3((L, 1, 2 * Cp)),                            # bfg
                full3((L, Cp, 2 * Cp)),                           # wsr (skip|res)
                full3((L, 1, 2 * Cp)),                            # bsr
            ],
            out_specs=pl.BlockSpec((1, Tp, Cp), lambda b: (b, 0, 0)),
        ),
        compiler_params=pltpu.CompilerParams(
            dimension_semantics=("parallel",),
            vmem_limit_bytes=vmem_limit),
    )(x_p, wfg0, wfg1, bfg, wsr, bsr)

    out = out_p[:, :T, :C]                   # drop channel / time padding
    return jnp.transpose(out, (0, 2, 1))     # back to (B, C, T)


def init_params(key, channels, num_layers):
    """Deterministic synthetic weights.

    PyTorch shapes per block: conv_filter/gate weight (C, C, 2), bias (C,);
    conv_res/skip weight (C, C, 1), bias (C,).  Kernel taps are stored already
    transposed to (C_in, C_out) so the Pallas kernel does x @ W directly.
    """
    C, L = channels, num_layers
    ks = jax.random.split(key, 10)
    scale = 0.1

    def mat(k):   # (L, C_in, C_out)
        return (scale * jax.random.normal(k, (L, C, C))).astype(jnp.float32)

    def vec(k):   # (L, 1, C)
        return (scale * jax.random.normal(k, (L, 1, C))).astype(jnp.float32)

    wf0, wf1, bf = mat(ks[0]), mat(ks[1]), vec(ks[2])
    wg0, wg1, bg = mat(ks[3]), mat(ks[4]), vec(ks[5])
    wres, bres = mat(ks[6]), vec(ks[7])
    wskip, bskip = mat(ks[8]), vec(ks[9])
    return (wf0, wf1, bf, wg0, wg1, bg, wres, bres, wskip, bskip)


def wavenet_reference(x_nct, params, *, num_layers):
    """Pure-JAX f32 reference mirroring the PyTorch forward (for validation)."""
    (wf0, wf1, bf, wg0, wg1, bg, wres, bres, wskip, bskip) = params
    x = jnp.transpose(x_nct, (0, 2, 1))           # (B, T, C)
    B, T, C = x.shape
    skip_sum = jnp.zeros_like(x)
    for l in range(num_layers):
        d = 2 ** l
        x_shift = jnp.concatenate(
            [jnp.zeros((B, d, C), x.dtype), x[:, : max(T - d, 0), :]], axis=1)[:, :T]
        f = jnp.tanh(x @ wf1[l] + x_shift @ wf0[l] + bf[l])
        g = jax.nn.sigmoid(x @ wg1[l] + x_shift @ wg0[l] + bg[l])
        out = f * g
        skip_sum = skip_sum + out @ wskip[l] + bskip[l]
        x = out @ wres[l] + bres[l] + x
    out = jnp.maximum(skip_sum, 0.0)
    return jnp.transpose(out, (0, 2, 1))


if __name__ == "__main__":
    B, C, T = 2, 8, 16
    NUM_LAYERS = 3

    key = jax.random.PRNGKey(0)
    kx, kp = jax.random.split(key)
    x = jax.random.normal(kx, (B, C, T), dtype=jnp.float32)   # PyTorch NCT layout
    params = init_params(kp, C, NUM_LAYERS)

    fwd = jax.jit(functools.partial(wavenet_temporal, num_layers=NUM_LAYERS))
    out = jax.block_until_ready(fwd(x, params))

    ref = wavenet_reference(x, params, num_layers=NUM_LAYERS)
    assert out.shape == (B, C, T)
    # bf16 matmul operands (f32 accumulation) -> small drift vs the f32 reference.
    max_err = float(jnp.max(jnp.abs(out - ref)))
    assert max_err < 2e-2, f"mismatch vs reference: max abs err {max_err}"

    print("KERNEL_OK")
</pallas_src>

<mosaic_0001>
module attributes {stable_mosaic.version = 11 : i64} {
  func.func @_wavenet_kernel(%arg0: i32, %arg1: memref<1x16x128xf32, #tpu.memory_space<vmem>>, %arg2: memref<3x128x256xbf16, #tpu.memory_space<vmem>>, %arg3: memref<3x128x256xbf16, #tpu.memory_space<vmem>>, %arg4: memref<3x1x256xf32, #tpu.memory_space<vmem>>, %arg5: memref<3x128x256xbf16, #tpu.memory_space<vmem>>, %arg6: memref<3x1x256xf32, #tpu.memory_space<vmem>>, %arg7: memref<1x16x128xf32, #tpu.memory_space<vmem>>) attributes {dimension_semantics = [#tpu.dimension_semantics<parallel>], iteration_bounds = array<i64: 2>, scalar_prefetch = 0 : i64, scratch_operands = 0 : i64, tpu.core_type = #tpu.core_type<tc>, window_params = [{transform_indices = @transform_0, window_bounds = array<i64: 1, 16, 128>}, {pipeline_mode = #tpu.pipeline_mode<synchronous>, transform_indices = @transform_1, window_bounds = array<i64: 3, 128, 256>}, {pipeline_mode = #tpu.pipeline_mode<synchronous>, transform_indices = @transform_2, window_bounds = array<i64: 3, 128, 256>}, {pipeline_mode = #tpu.pipeline_mode<synchronous>, transform_indices = @transform_3, window_bounds = array<i64: 3, 1, 256>}, {pipeline_mode = #tpu.pipeline_mode<synchronous>, transform_indices = @transform_4, window_bounds = array<i64: 3, 128, 256>}, {pipeline_mode = #tpu.pipeline_mode<synchronous>, transform_indices = @transform_5, window_bounds = array<i64: 3, 1, 256>}, {transform_indices = @transform_6, window_bounds = array<i64: 1, 16, 128>}]} {
    %c0 = arith.constant 0 : index
    %c0_0 = arith.constant 0 : index
    %c0_1 = arith.constant 0 : index
    %0 = vector.load %arg1[%c0, %c0_0, %c0_1] : memref<1x16x128xf32, #tpu.memory_space<vmem>>, vector<1x16x128xf32>
    %1 = vector.shape_cast %0 : vector<1x16x128xf32> to vector<16x128xf32>
    %cst = arith.constant 0.000000e+00 : f32
    %2 = vector.broadcast %cst : f32 to vector<16x128xf32>
    %3 = tpu.iota {dimensions = array<i32: 0>} : vector<16x128xi32>
    %4 = tpu.iota {dimensions = array<i32: 1>} : vector<1x256xi32>
    %c128_i32 = arith.constant 128 : i32
    %5 = vector.broadcast %c128_i32 : i32 to vector<1x256xi32>
    %6 = arith.cmpi slt, %4, %5 : vector<1x256xi32>
    %cst_2 = arith.constant 1.000000e+00 : f32
    %cst_3 = arith.constant 5.000000e-01 : f32
    %7 = vector.broadcast %cst_2 : f32 to vector<1x256xf32>
    %8 = vector.broadcast %cst_3 : f32 to vector<1x256xf32>
    %9 = arith.select %6, %7, %8 : vector<1x256xi1>, vector<1x256xf32>
    %c1_i32 = arith.constant 1 : i32
    %10 = vector.broadcast %c1_i32 : i32 to vector<16x128xi32>
    %11 = arith.cmpi sge, %3, %10 : vector<16x128xi32>
    %c1_i32_4 = arith.constant 1 : i32
    %12 = tpu.dynamic_rotate %1 by %c1_i32_4 dim 0 : vector<16x128xf32>, i32 -> vector<16x128xf32>
    %cst_5 = arith.constant 0.000000e+00 : f32
    %13 = vector.broadcast %cst_5 : f32 to vector<16x128xf32>
    %14 = arith.select %11, %12, %13 : vector<16x128xi1>, vector<16x128xf32>
    %15 = arith.truncf %1 : vector<16x128xf32> to vector<16x128xbf16>
    %16 = arith.truncf %14 : vector<16x128xf32> to vector<16x128xbf16>
    %c0_6 = arith.constant 0 : index
    %c0_7 = arith.constant 0 : index
    %c0_8 = arith.constant 0 : index
    %17 = vector.load %arg3[%c0_6, %c0_7, %c0_8] : memref<3x128x256xbf16, #tpu.memory_space<vmem>>, vector<1x128x256xbf16>
    %18 = vector.shape_cast %17 : vector<1x128x256xbf16> to vector<128x256xbf16>
    %cst_9 = arith.constant dense<0.000000e+00> : vector<16x256xf32>
    %19 = tpu.matmul %15, %18, %cst_9 {dimension_numbers = #tpu.dot_dimension_numbers<[1], [0], [0], [1], [0, 0, 1, 1], [], []>} : vector<16x128xbf16>, vector<128x256xbf16>, vector<16x256xf32> -> vector<16x256xf32>
    %c0_10 = arith.constant 0 : index
    %c0_11 = arith.constant 0 : index
    %c0_12 = arith.constant 0 : index
    %20 = vector.load %arg2[%c0_10, %c0_11, %c0_12] : memref<3x128x256xbf16, #tpu.memory_space<vmem>>, vector<1x128x256xbf16>
    %21 = vector.shape_cast %20 : vector<1x128x256xbf16> to vector<128x256xbf16>
    %cst_13 = arith.constant dense<0.000000e+00> : vector<16x256xf32>
    %22 = tpu.matmul %16, %21, %cst_13 {dimension_numbers = #tpu.dot_dimension_numbers<[1], [0], [0], [1], [0, 0, 1, 1], [], []>} : vector<16x128xbf16>, vector<128x256xbf16>, vector<16x256xf32> -> vector<16x256xf32>
    %23 = arith.addf %19, %22 : vector<16x256xf32>
    %c0_14 = arith.constant 0 : index
    %c0_15 = arith.constant 0 : index
    %c0_16 = arith.constant 0 : index
    %24 = vector.load %arg4[%c0_14, %c0_15, %c0_16] : memref<3x1x256xf32, #tpu.memory_space<vmem>>, vector<1x1x256xf32>
    %25 = vector.shape_cast %24 : vector<1x1x256xf32> to vector<1x256xf32>
    %26 = vector.broadcast %25 : vector<1x256xf32> to vector<16x256xf32>
    %27 = arith.addf %23, %26 : vector<16x256xf32>
    %28 = vector.broadcast %9 : vector<1x256xf32> to vector<16x256xf32>
    %29 = arith.mulf %27, %28 : vector<16x256xf32>
    %30 = math.tanh %29 : vector<16x256xf32>
    %31 = vector.extract_strided_slice %30 {offsets = [0, 0], sizes = [16, 128], strides = [1, 1]} : vector<16x256xf32> to vector<16x128xf32>
    %32 = vector.extract_strided_slice %30 {offsets = [0, 128], sizes = [16, 128], strides = [1, 1]} : vector<16x256xf32> to vector<16x128xf32>
    %cst_17 = arith.constant 5.000000e-01 : f32
    %33 = vector.broadcast %cst_17 : f32 to vector<16x128xf32>
    %34 = arith.mulf %32, %33 : vector<16x128xf32>
    %cst_18 = arith.constant 5.000000e-01 : f32
    %35 = vector.broadcast %cst_18 : f32 to vector<16x128xf32>
    %36 = arith.addf %34, %35 : vector<16x128xf32>
    %37 = arith.mulf %31, %36 : vector<16x128xf32>
    %38 = arith.truncf %37 : vector<16x128xf32> to vector<16x128xbf16>
    %c0_19 = arith.constant 0 : index
    %c0_20 = arith.constant 0 : index
    %c0_21 = arith.constant 0 : index
    %39 = vector.load %arg5[%c0_19, %c0_20, %c0_21] : memref<3x128x256xbf16, #tpu.memory_space<vmem>>, vector<1x128x256xbf16>
    %40 = vector.shape_cast %39 : vector<1x128x256xbf16> to vector<128x256xbf16>
    %cst_22 = arith.constant dense<0.000000e+00> : vector<16x256xf32>
    %41 = tpu.matmul %38, %40, %cst_22 {dimension_numbers = #tpu.dot_dimension_numbers<[1], [0], [0], [1], [0, 0, 1, 1], [], []>} : vector<16x128xbf16>, vector<128x256xbf16>, vector<16x256xf32> -> vector<16x256xf32>
    %c0_23 = arith.constant 0 : index
    %c0_24 = arith.constant 0 : index
    %c0_25 = arith.constant 0 : index
    %42 = vector.load %arg6[%c0_23, %c0_24, %c0_25] : memref<3x1x256xf32, #tpu.memory_space<vmem>>, vector<1x1x256xf32>
    %43 = vector.shape_cast %42 : vector<1x1x256xf32> to vector<1x256xf32>
    %44 = vector.broadcast %43 : vector<1x256xf32> to vector<16x256xf32>
    %45 = arith.addf %41, %44 : vector<16x256xf32>
    %46 = vector.extract_strided_slice %45 {offsets = [0, 0], sizes = [16, 128], strides = [1, 1]} : vector<16x256xf32> to vector<16x128xf32>
    %47 = arith.addf %2, %46 : vector<16x128xf32>
    %48 = vector.extract_strided_slice %45 {offsets = [0, 128], sizes = [16, 128], strides = [1, 1]} : vector<16x256xf32> to vector<16x128xf32>
    %49 = arith.addf %48, %1 : vector<16x128xf32>
    %c2_i32 = arith.constant 2 : i32
    %50 = vector.broadcast %c2_i32 : i32 to vector<16x128xi32>
    %51 = arith.cmpi sge, %3, %50 : vector<16x128xi32>
    %c2_i32_26 = arith.constant 2 : i32
    %52 = tpu.dynamic_rotate %49 by %c2_i32_26 dim 0 : vector<16x128xf32>, i32 -> vector<16x128xf32>
    %cst_27 = arith.constant 0.000000e+00 : f32
    %53 = vector.broadcast %cst_27 : f32 to vector<16x128xf32>
    %54 = arith.select %51, %52, %53 : vector<16x128xi1>, vector<16x128xf32>
    %55 = arith.truncf %49 : vector<16x128xf32> to vector<16x128xbf16>
    %56 = arith.truncf %54 : vector<16x128xf32> to vector<16x128xbf16>
    %c1 = arith.constant 1 : index
    %c0_28 = arith.constant 0 : index
    %c0_29 = arith.constant 0 : index
    %57 = vector.load %arg3[%c1, %c0_28, %c0_29] : memref<3x128x256xbf16, #tpu.memory_space<vmem>>, vector<1x128x256xbf16>
    %58 = vector.shape_cast %57 : vector<1x128x256xbf16> to vector<128x256xbf16>
    %cst_30 = arith.constant dense<0.000000e+00> : vector<16x256xf32>
    %59 = tpu.matmul %55, %58, %cst_30 {dimension_numbers = #tpu.dot_dimension_numbers<[1], [0], [0], [1], [0, 0, 1, 1], [], []>} : vector<16x128xbf16>, vector<128x256xbf16>, vector<16x256xf32> -> vector<16x256xf32>
    %c1_31 = arith.constant 1 : index
    %c0_32 = arith.constant 0 : index
    %c0_33 = arith.constant 0 : index
    %60 = vector.load %arg2[%c1_31, %c0_32, %c0_33] : memref<3x128x256xbf16, #tpu.memory_space<vmem>>, vector<1x128x256xbf16>
    %61 = vector.shape_cast %60 : vector<1x128x256xbf16> to vector<128x256xbf16>
    %cst_34 = arith.constant dense<0.000000e+00> : vector<16x256xf32>
    %62 = tpu.matmul %56, %61, %cst_34 {dimension_numbers = #tpu.dot_dimension_numbers<[1], [0], [0], [1], [0, 0, 1, 1], [], []>} : vector<16x128xbf16>, vector<128x256xbf16>, vector<16x256xf32> -> vector<16x256xf32>
    %63 = arith.addf %59, %62 : vector<16x256xf32>
    %c1_35 = arith.constant 1 : index
    %c0_36 = arith.constant 0 : index
    %c0_37 = arith.constant 0 : index
    %64 = vector.load %arg4[%c1_35, %c0_36, %c0_37] : memref<3x1x256xf32, #tpu.memory_space<vmem>>, vector<1x1x256xf32>
    %65 = vector.shape_cast %64 : vector<1x1x256xf32> to vector<1x256xf32>
    %66 = vector.broadcast %65 : vector<1x256xf32> to vector<16x256xf32>
    %67 = arith.addf %63, %66 : vector<16x256xf32>
    %68 = vector.broadcast %9 : vector<1x256xf32> to vector<16x256xf32>
    %69 = arith.mulf %67, %68 : vector<16x256xf32>
    %70 = math.tanh %69 : vector<16x256xf32>
    %71 = vector.extract_strided_slice %70 {offsets = [0, 0], sizes = [16, 128], strides = [1, 1]} : vector<16x256xf32> to vector<16x128xf32>
    %72 = vector.extract_strided_slice %70 {offsets = [0, 128], sizes = [16, 128], strides = [1, 1]} : vector<16x256xf32> to vector<16x128xf32>
    %cst_38 = arith.constant 5.000000e-01 : f32
    %73 = vector.broadcast %cst_38 : f32 to vector<16x128xf32>
    %74 = arith.mulf %72, %73 : vector<16x128xf32>
    %cst_39 = arith.constant 5.000000e-01 : f32
    %75 = vector.broadcast %cst_39 : f32 to vector<16x128xf32>
    %76 = arith.addf %74, %75 : vector<16x128xf32>
    %77 = arith.mulf %71, %76 : vector<16x128xf32>
    %78 = arith.truncf %77 : vector<16x128xf32> to vector<16x128xbf16>
    %c1_40 = arith.constant 1 : index
    %c0_41 = arith.constant 0 : index
    %c0_42 = arith.constant 0 : index
    %79 = vector.load %arg5[%c1_40, %c0_41, %c0_42] : memref<3x128x256xbf16, #tpu.memory_space<vmem>>, vector<1x128x256xbf16>
    %80 = vector.shape_cast %79 : vector<1x128x256xbf16> to vector<128x256xbf16>
    %cst_43 = arith.constant dense<0.000000e+00> : vector<16x256xf32>
    %81 = tpu.matmul %78, %80, %cst_43 {dimension_numbers = #tpu.dot_dimension_numbers<[1], [0], [0], [1], [0, 0, 1, 1], [], []>} : vector<16x128xbf16>, vector<128x256xbf16>, vector<16x256xf32> -> vector<16x256xf32>
    %c1_44 = arith.constant 1 : index
    %c0_45 = arith.constant 0 : index
    %c0_46 = arith.constant 0 : index
    %82 = vector.load %arg6[%c1_44, %c0_45, %c0_46] : memref<3x1x256xf32, #tpu.memory_space<vmem>>, vector<1x1x256xf32>
    %83 = vector.shape_cast %82 : vector<1x1x256xf32> to vector<1x256xf32>
    %84 = vector.broadcast %83 : vector<1x256xf32> to vector<16x256xf32>
    %85 = arith.addf %81, %84 : vector<16x256xf32>
    %86 = vector.extract_strided_slice %85 {offsets = [0, 0], sizes = [16, 128], strides = [1, 1]} : vector<16x256xf32> to vector<16x128xf32>
    %87 = arith.addf %47, %86 : vector<16x128xf32>
    %88 = vector.extract_strided_slice %85 {offsets = [0, 128], sizes = [16, 128], strides = [1, 1]} : vector<16x256xf32> to vector<16x128xf32>
    %89 = arith.addf %88, %49 : vector<16x128xf32>
    %c4_i32 = arith.constant 4 : i32
    %90 = vector.broadcast %c4_i32 : i32 to vector<16x128xi32>
    %91 = arith.cmpi sge, %3, %90 : vector<16x128xi32>
    %c4_i32_47 = arith.constant 4 : i32
    %92 = tpu.dynamic_rotate %89 by %c4_i32_47 dim 0 : vector<16x128xf32>, i32 -> vector<16x128xf32>
    %cst_48 = arith.constant 0.000000e+00 : f32
    %93 = vector.broadcast %cst_48 : f32 to vector<16x128xf32>
    %94 = arith.select %91, %92, %93 : vector<16x128xi1>, vector<16x128xf32>
    %95 = arith.truncf %89 : vector<16x128xf32> to vector<16x128xbf16>
    %96 = arith.truncf %94 : vector<16x128xf32> to vector<16x128xbf16>
    %c2 = arith.constant 2 : index
    %c0_49 = arith.constant 0 : index
    %c0_50 = arith.constant 0 : index
    %97 = vector.load %arg3[%c2, %c0_49, %c0_50] : memref<3x128x256xbf16, #tpu.memory_space<vmem>>, vector<1x128x256xbf16>
    %98 = vector.shape_cast %97 : vector<1x128x256xbf16> to vector<128x256xbf16>
    %cst_51 = arith.constant dense<0.000000e+00> : vector<16x256xf32>
    %99 = tpu.matmul %95, %98, %cst_51 {dimension_numbers = #tpu.dot_dimension_numbers<[1], [0], [0], [1], [0, 0, 1, 1], [], []>} : vector<16x128xbf16>, vector<128x256xbf16>, vector<16x256xf32> -> vector<16x256xf32>
    %c2_52 = arith.constant 2 : index
    %c0_53 = arith.constant 0 : index
    %c0_54 = arith.constant 0 : index
    %100 = vector.load %arg2[%c2_52, %c0_53, %c0_54] : memref<3x128x256xbf16, #tpu.memory_space<vmem>>, vector<1x128x256xbf16>
    %101 = vector.shape_cast %100 : vector<1x128x256xbf16> to vector<128x256xbf16>
    %cst_55 = arith.constant dense<0.000000e+00> : vector<16x256xf32>
    %102 = tpu.matmul %96, %101, %cst_55 {dimension_numbers = #tpu.dot_dimension_numbers<[1], [0], [0], [1], [0, 0, 1, 1], [], []>} : vector<16x128xbf16>, vector<128x256xbf16>, vector<16x256xf32> -> vector<16x256xf32>
    %103 = arith.addf %99, %102 : vector<16x256xf32>
    %c2_56 = arith.constant 2 : index
    %c0_57 = arith.constant 0 : index
    %c0_58 = arith.constant 0 : index
    %104 = vector.load %arg4[%c2_56, %c0_57, %c0_58] : memref<3x1x256xf32, #tpu.memory_space<vmem>>, vector<1x1x256xf32>
    %105 = vector.shape_cast %104 : vector<1x1x256xf32> to vector<1x256xf32>
    %106 = vector.broadcast %105 : vector<1x256xf32> to vector<16x256xf32>
    %107 = arith.addf %103, %106 : vector<16x256xf32>
    %108 = vector.broadcast %9 : vector<1x256xf32> to vector<16x256xf32>
    %109 = arith.mulf %107, %108 : vector<16x256xf32>
    %110 = math.tanh %109 : vector<16x256xf32>
    %111 = vector.extract_strided_slice %110 {offsets = [0, 0], sizes = [16, 128], strides = [1, 1]} : vector<16x256xf32> to vector<16x128xf32>
    %112 = vector.extract_strided_slice %110 {offsets = [0, 128], sizes = [16, 128], strides = [1, 1]} : vector<16x256xf32> to vector<16x128xf32>
    %cst_59 = arith.constant 5.000000e-01 : f32
    %113 = vector.broadcast %cst_59 : f32 to vector<16x128xf32>
    %114 = arith.mulf %112, %113 : vector<16x128xf32>
    %cst_60 = arith.constant 5.000000e-01 : f32
    %115 = vector.broadcast %cst_60 : f32 to vector<16x128xf32>
    %116 = arith.addf %114, %115 : vector<16x128xf32>
    %117 = arith.mulf %111, %116 : vector<16x128xf32>
    %118 = arith.truncf %117 : vector<16x128xf32> to vector<16x128xbf16>
    %c2_61 = arith.constant 2 : index
    %c0_62 = arith.constant 0 : index
    %c0_63 = arith.constant 0 : index
    %119 = vector.load %arg5[%c2_61, %c0_62, %c0_63] : memref<3x128x256xbf16, #tpu.memory_space<vmem>>, vector<1x128x256xbf16>
    %120 = vector.shape_cast %119 : vector<1x128x256xbf16> to vector<128x256xbf16>
    %cst_64 = arith.constant dense<0.000000e+00> : vector<16x256xf32>
    %121 = tpu.matmul %118, %120, %cst_64 {dimension_numbers = #tpu.dot_dimension_numbers<[1], [0], [0], [1], [0, 0, 1, 1], [], []>} : vector<16x128xbf16>, vector<128x256xbf16>, vector<16x256xf32> -> vector<16x256xf32>
    %c2_65 = arith.constant 2 : index
    %c0_66 = arith.constant 0 : index
    %c0_67 = arith.constant 0 : index
    %122 = vector.load %arg6[%c2_65, %c0_66, %c0_67] : memref<3x1x256xf32, #tpu.memory_space<vmem>>, vector<1x1x256xf32>
    %123 = vector.shape_cast %122 : vector<1x1x256xf32> to vector<1x256xf32>
    %124 = vector.broadcast %123 : vector<1x256xf32> to vector<16x256xf32>
    %125 = arith.addf %121, %124 : vector<16x256xf32>
    %126 = vector.extract_strided_slice %125 {offsets = [0, 0], sizes = [16, 128], strides = [1, 1]} : vector<16x256xf32> to vector<16x128xf32>
    %127 = arith.addf %87, %126 : vector<16x128xf32>
    %cst_68 = arith.constant 0.000000e+00 : f32
    %128 = vector.broadcast %cst_68 : f32 to vector<16x128xf32>
    %129 = arith.maximumf %127, %128 : vector<16x128xf32>
    %c0_69 = arith.constant 0 : index
    %c0_70 = arith.constant 0 : index
    %c0_71 = arith.constant 0 : index
    %130 = vector.load %arg7[%c0_69, %c0_70, %c0_71] : memref<1x16x128xf32, #tpu.memory_space<vmem>>, vector<1x16x128xf32>
    %131 = vector.shape_cast %130 : vector<1x16x128xf32> to vector<16x128xf32>
    %132 = vector.shape_cast %129 : vector<16x128xf32> to vector<1x16x128xf32>
    tpu.vector_store %arg7[%c0_69, %c0_70, %c0_71], %132 {strides = array<i32>} : memref<1x16x128xf32, #tpu.memory_space<vmem>>, vector<1x16x128xf32>,
    return
  }
  func.func @transform_0(%arg0: i32) -> (i32, i32, i32) {
    %c0_i32 = arith.constant 0 : i32
    %c0_i32_0 = arith.constant 0 : i32
    %c0_i32_1 = arith.constant 0 : i32
    return %arg0, %c0_i32, %c0_i32_0 : i32, i32, i32
  }
  func.func @transform_1(%arg0: i32) -> (i32, i32, i32) {
    %c0_i32 = arith.constant 0 : i32
    %c0_i32_0 = arith.constant 0 : i32
    %c0_i32_1 = arith.constant 0 : i32
    %c0_i32_2 = arith.constant 0 : i32
    return %c0_i32, %c0_i32_0, %c0_i32_1 : i32, i32, i32
  }
  func.func @transform_2(%arg0: i32) -> (i32, i32, i32) {
    %c0_i32 = arith.constant 0 : i32
    %c0_i32_0 = arith.constant 0 : i32
    %c0_i32_1 = arith.constant 0 : i32
    %c0_i32_2 = arith.constant 0 : i32
    return %c0_i32, %c0_i32_0, %c0_i32_1 : i32, i32, i32
  }
  func.func @transform_3(%arg0: i32) -> (i32, i32, i32) {
    %c0_i32 = arith.constant 0 : i32
    %c0_i32_0 = arith.constant 0 : i32
    %c0_i32_1 = arith.constant 0 : i32
    %c0_i32_2 = arith.constant 0 : i32
    return %c0_i32, %c0_i32_0, %c0_i32_1 : i32, i32, i32
  }
  func.func @transform_4(%arg0: i32) -> (i32, i32, i32) {
    %c0_i32 = arith.constant 0 : i32
    %c0_i32_0 = arith.constant 0 : i32
    %c0_i32_1 = arith.constant 0 : i32
    %c0_i32_2 = arith.constant 0 : i32
    return %c0_i32, %c0_i32_0, %c0_i32_1 : i32, i32, i32
  }
  func.func @transform_5(%arg0: i32) -> (i32, i32, i32) {
    %c0_i32 = arith.constant 0 : i32
    %c0_i32_0 = arith.constant 0 : i32
    %c0_i32_1 = arith.constant 0 : i32
    %c0_i32_2 = arith.constant 0 : i32
    return %c0_i32, %c0_i32_0, %c0_i32_1 : i32, i32, i32
  }
  func.func @transform_6(%arg0: i32) -> (i32, i32, i32) {
    %c0_i32 = arith.constant 0 : i32
    %c0_i32_0 = arith.constant 0 : i32
    %c0_i32_1 = arith.constant 0 : i32
    return %arg0, %c0_i32, %c0_i32_0 : i32, i32, i32
  }
}

</mosaic_0001>

<llo_original>
// kernel: wavenet_temporal.1
$region0: #{wavenet_temporal.1}
  #allocation0 [shape = 'u32[]', space=smem, size = 0x4, offset = 0x4, fixed_abs, tag = 'smem constant byte address 0x4 - core index']
  #allocation1 [shape = 'u32[144,128]{1,0:T(1,128)}', space=vmem, size = 0x12000, scoped, tag = 'internal scratch']
  %s0 = inlined_call_operand.vmem [shape: f32[2,16,128], index: 0, kind: input, shape index: {}]
  %s1 = inlined_call_operand.vmem [shape: bf16[3,128,256], index: 1, kind: input, shape index: {}]
  %s2 = inlined_call_operand.vmem [shape: bf16[3,128,256], index: 2, kind: input, shape index: {}]
  %s3 = inlined_call_operand.vmem [shape: f32[3,1,256], index: 3, kind: input, shape index: {}]
  %s4 = inlined_call_operand.vmem [shape: bf16[3,128,256], index: 4, kind: input, shape index: {}]
  %s5 = inlined_call_operand.vmem [shape: f32[3,1,256], index: 5, kind: input, shape index: {}]
  %s6 = inlined_call_operand.vmem [shape: f32[2,16,128], index: 6, kind: output, shape index: {}]
  %s7 = sld [smem:[#allocation0]]
  $region57: #{wavenet_temporal.1} parent=0
    _
  %s9 = ssub.s32 1, %s7
  %s10 = scalar_select 0, %s9, %s7
  loop: start=0, step=1, limit=4
  $region2: #{wavenet_temporal.1} parent=0 // loop_pre_header
    _
  $region3: #{wavenet_temporal.1} parent=0 // loop_header
    %s12 = sphi 0, %s16
    %p13 = scmp.ge.s32.totalorder %s12, 4
    %s22 = sphi 0, %s24
    %s25 = sphi 0, %s22
    %s26 = sphi 0, %s25
    %s42 = sphi 0, %s26
    %s46 = sphi 0, %s46
    %s48 = sphi 0, %s46
    %s49 = sphi 0, %s48
    %s63 = sphi 0, %s49
    %s67 = sphi 0, %s67
    %s69 = sphi 0, %s67
    %s70 = sphi 0, %s69
    %s84 = sphi 0, %s70
    %s88 = sphi 0, %s88
    %s90 = sphi 0, %s88
    %s91 = sphi 0, %s90
    %s105 = sphi 0, %s91
    %s109 = sphi 0, %s109
    %s111 = sphi 0, %s109
    %s112 = sphi 0, %s111
    %s126 = sphi 0, %s112
    %s130 = sphi 0, %s130
    %s132 = sphi 0, %s130
    %s133 = sphi 0, %s132
    %s147 = sphi 0, %s133
    %s153 = sphi 0, %s155
    %s156 = sphi 0, %s153
    %s157 = sphi 0, %s156
    %s173 = sphi 0, %s157
  $region4: #{wavenet_temporal.1} parent=0 // loop_header_branch
    %15 = sbr.rel (%p13) target = $region8
  $region5: #{wavenet_temporal.1} parent=0 // loop_body
    %s17 = ssub.s32 %s12, 1
    %s18 = ssub.s32 %s12, 2
    %s19 = sadd.s32 %s12, 1
    %s20 = ssub.s32 %s12, %s19
    %p21 = scmp.eq.s32.totalorder %s20, 0
    %s23 = sadd.s32 %s22, 1
    %s24 = scalar_select %p21, %s22, %s23
    %p27 = pneg %p21
    %p28 = scmp.eq.s32.totalorder %s12, 1
    %p29 = por %p27, %p28
    %p30 = scmp.ne.s32.totalorder %s22, %s25
    %p31 = scmp.eq.s32.totalorder %s12, 0
    %p32 = por %p30, %p31
    %p33 = scmp.ne.s32.totalorder %s22, %s25
    %p34 = scmp.eq.s32.totalorder %s17, 1
    %p35 = por %p33, %p34
    %p36 = scmp.ne.s32.totalorder %s25, %s26
    %p37 = scmp.eq.s32.totalorder %s17, 0
    %p38 = por %p36, %p37
    %p39 = scmp.ne.s32.totalorder %s25, %s26
    %p40 = scmp.eq.s32.totalorder %s18, 1
    %p41 = por %p39, %p40
    %p43 = scmp.ne.s32.totalorder %s26, %s42
    %p44 = scmp.eq.s32.totalorder %s18, 0
    %p45 = por %p43, %p44
    %s47 = sadd.s32 %s46, 1
    %p50 = scmp.eq.s32.totalorder %s12, 1
    %p51 = scmp.ne.s32.totalorder %s46, %s48
    %p52 = scmp.eq.s32.totalorder %s12, 0
    %p53 = por %p51, %p52
    %p54 = scmp.ne.s32.totalorder %s46, %s48
    %p55 = scmp.eq.s32.totalorder %s17, 1
    %p56 = por %p54, %p55
    %p57 = scmp.ne.s32.totalorder %s48, %s49
    %p58 = scmp.eq.s32.totalorder %s17, 0
    %p59 = por %p57, %p58
    %p60 = scmp.ne.s32.totalorder %s48, %s49
    %p61 = scmp.eq.s32.totalorder %s18, 1
    %p62 = por %p60, %p61
    %p64 = scmp.ne.s32.totalorder %s49, %s63
    %p65 = scmp.eq.s32.totalorder %s18, 0
    %p66 = por %p64, %p65
    %s68 = sadd.s32 %s67, 1
    %p71 = scmp.eq.s32.totalorder %s12, 1
    %p72 = scmp.ne.s32.totalorder %s67, %s69
    %p73 = scmp.eq.s32.totalorder %s12, 0
    %p74 = por %p72, %p73
    %p75 = scmp.ne.s32.totalorder %s67, %s69
    %p76 = scmp.eq.s32.totalorder %s17, 1
    %p77 = por %p75, %p76
    %p78 = scmp.ne.s32.totalorder %s69, %s70
    %p79 = scmp.eq.s32.totalorder %s17, 0
    %p80 = por %p78, %p79
    %p81 = scmp.ne.s32.totalorder %s69, %s70
    %p82 = scmp.eq.s32.totalorder %s18, 1
    %p83 = por %p81, %p82
    %p85 = scmp.ne.s32.totalorder %s70, %s84
    %p86 = scmp.eq.s32.totalorder %s18, 0
    %p87 = por %p85, %p86
    %s89 = sadd.s32 %s88, 1
    %p92 = scmp.eq.s32.totalorder %s12, 1
    %p93 = scmp.ne.s32.totalorder %s88, %s90
    %p94 = scmp.eq.s32.totalorder %s12, 0
    %p95 = por %p93, %p94
    %p96 = scmp.ne.s32.totalorder %s88, %s90
    %p97 = scmp.eq.s32.totalorder %s17, 1
    %p98 = por %p96, %p97
    %p99 = scmp.ne.s32.totalorder %s90, %s91
    %p100 = scmp.eq.s32.totalorder %s17, 0
    %p101 = por %p99, %p100
    %p102 = scmp.ne.s32.totalorder %s90, %s91
    %p103 = scmp.eq.s32.totalorder %s18, 1
    %p104 = por %p102, %p103
    %p106 = scmp.ne.s32.totalorder %s91, %s105
    %p107 = scmp.eq.s32.totalorder %s18, 0
    %p108 = por %p106, %p107
    %s110 = sadd.s32 %s109, 1
    %p113 = scmp.eq.s32.totalorder %s12, 1
    %p114 = scmp.ne.s32.totalorder %s109, %s111
    %p115 = scmp.eq.s32.totalorder %s12, 0
    %p116 = por %p114, %p115
    %p117 = scmp.ne.s32.totalorder %s109, %s111
    %p118 = scmp.eq.s32.totalorder %s17, 1
    %p119 = por %p117, %p118
    %p120 = scmp.ne.s32.totalorder %s111, %s112
    %p121 = scmp.eq.s32.totalorder %s17, 0
    %p122 = por %p120, %p121
    %p123 = scmp.ne.s32.totalorder %s111, %s112
    %p124 = scmp.eq.s32.totalorder %s18, 1
    %p125 = por %p123, %p124
    %p127 = scmp.ne.s32.totalorder %s112, %s126
    %p128 = scmp.eq.s32.totalorder %s18, 0
    %p129 = por %p127, %p128
    %s131 = sadd.s32 %s130, 1
    %p134 = scmp.eq.s32.totalorder %s12, 1
    %p135 = scmp.ne.s32.totalorder %s130, %s132
    %p136 = scmp.eq.s32.totalorder %s12, 0
    %p137 = por %p135, %p136
    %p138 = scmp.ne.s32.totalorder %s130, %s132
    %p139 = scmp.eq.s32.totalorder %s17, 1
    %p140 = por %p138, %p139
    %p141 = scmp.ne.s32.totalorder %s132, %s133
    %p142 = scmp.eq.s32.totalorder %s17, 0
    %p143 = por %p141, %p142
    %p144 = scmp.ne.s32.totalorder %s132, %s133
    %p145 = scmp.eq.s32.totalorder %s18, 1
    %p146 = por %p144, %p145
    %p148 = scmp.ne.s32.totalorder %s133, %s147
    %p149 = scmp.eq.s32.totalorder %s18, 0
    %p150 = por %p148, %p149
    %s151 = ssub.s32 %s12, %s19
    %p152 = scmp.eq.s32.totalorder %s151, 0
    %s154 = sadd.s32 %s153, 1
    %s155 = scalar_select %p152, %s153, %s154
    %p158 = pneg %p152
    %p159 = scmp.eq.s32.totalorder %s12, 1
    %p160 = por %p158, %p159
    %p161 = scmp.ne.s32.totalorder %s153, %s156
    %p162 = scmp.eq.s32.totalorder %s12, 0
    %p163 = por %p161, %p162
    %p164 = scmp.ne.s32.totalorder %s153, %s156
    %p165 = scmp.eq.s32.totalorder %s17, 1
    %p166 = por %p164, %p165
    %p167 = scmp.ne.s32.totalorder %s156, %s157
    %p168 = scmp.eq.s32.totalorder %s17, 0
    %p169 = por %p167, %p168
    %p170 = scmp.ne.s32.totalorder %s156, %s157
    %p171 = scmp.eq.s32.totalorder %s18, 1
    %p172 = por %p170, %p171
    %p174 = scmp.ne.s32.totalorder %s157, %s173
    %p175 = scmp.eq.s32.totalorder %s18, 0
    %p176 = por %p174, %p175
    %p177 = scmp.le.s32.totalorder 1, %s12
    %p178 = scmp.lt.s32.totalorder %s12, 3
    %p179 = pnand %p177, %p178
    %p180 = pneg %p179
    // Predicated region
    $region9: #{wavenet_temporal.1} parent=5 // pred_check
      _
    $region10: #{wavenet_temporal.1} parent=5 // pred_check_branch
      %182 = sbr.rel (%p179) target = $region12
    $region11: #{wavenet_temporal.1} parent=5 // pred_region
      %s183 = ssub.s32 %s12, 1
      // Predicated region
      $region13: #{wavenet_temporal.1} parent=11 // pred_check
        %p184 = pneg %p59
      $region14: #{wavenet_temporal.1} parent=11 // pred_check_branch
        %186 = sbr.rel (%p184) target = $region16
      $region15: #{wavenet_temporal.1} parent=11 // pred_region
        _
      $region16: #{wavenet_temporal.1} parent=11 // pred_fallthru
        _
      // Predicated region
      $region17: #{wavenet_temporal.1} parent=11 // pred_check
        %p187 = pneg %p80
      $region18: #{wavenet_temporal.1} parent=11 // pred_check_branch
        %189 = sbr.rel (%p187) target = $region20
      $region19: #{wavenet_temporal.1} parent=11 // pred_region
        _
      $region20: #{wavenet_temporal.1} parent=11 // pred_fallthru
        _
      // Predicated region
      $region21: #{wavenet_temporal.1} parent=11 // pred_check
        %p190 = pneg %p101
      $region22: #{wavenet_temporal.1} parent=11 // pred_check_branch
        %192 = sbr.rel (%p190) target = $region24
      $region23: #{wavenet_temporal.1} parent=11 // pred_region
        _
      $region24: #{wavenet_temporal.1} parent=11 // pred_fallthru
        _
      // Predicated region
      $region25: #{wavenet_temporal.1} parent=11 // pred_check
        %p193 = pneg %p122
      $region26: #{wavenet_temporal.1} parent=11 // pred_check_branch
        %195 = sbr.rel (%p193) target = $region28
      $region27: #{wavenet_temporal.1} parent=11 // pred_region
        _
      $region28: #{wavenet_temporal.1} parent=11 // pred_fallthru
        _
      // Predicated region
      $region29: #{wavenet_temporal.1} parent=11 // pred_check
        %p196 = pneg %p143
      $region30: #{wavenet_temporal.1} parent=11 // pred_check_branch
        %198 = sbr.rel (%p196) target = $region32
      $region31: #{wavenet_temporal.1} parent=11 // pred_region
        _
      $region32: #{wavenet_temporal.1} parent=11 // pred_fallthru
        _
    $region12: #{wavenet_temporal.1} parent=5 // pred_fallthru
      _
    %p199 = scmp.lt.s32.totalorder %s12, 2
    // Predicated region
    $region33: #{wavenet_temporal.1} parent=5 // pred_check
      %p200 = pneg %p199
    $region34: #{wavenet_temporal.1} parent=5 // pred_check_branch
      %202 = sbr.rel (%p200) target = $region36
    $region35: #{wavenet_temporal.1} parent=5 // pred_region
      // Predicated region
      $region37: #{wavenet_temporal.1} parent=35 // pred_check
        %p203 = pneg %p32
      $region38: #{wavenet_temporal.1} parent=35 // pred_check_branch
        %205 = sbr.rel (%p203) target = $region40
      $region39: #{wavenet_temporal.1} parent=35 // pred_region
        %p206 = scmp.lt.s32.totalorder %s12, 1
        %s207 = scalar_select %p206, %s12, 1
        %s208 = smul.addr %s207, 2
        %s209 = smul.addr %s208, 8
        %s210 = scalar_lea.vmem %s0, %s209
      $region40: #{wavenet_temporal.1} parent=35 // pred_fallthru
        _
    $region36: #{wavenet_temporal.1} parent=5 // pred_fallthru
      _
    %p211 = scmp.le.s32.totalorder 1, %s12
    %p212 = scmp.lt.s32.totalorder %s12, 3
    %p213 = pnand %p211, %p212
    %p214 = pneg %p213
    // Predicated region
    $region41: #{wavenet_temporal.1} parent=5 // pred_check
      _
    $region42: #{wavenet_temporal.1} parent=5 // pred_check_branch
      %216 = sbr.rel (%p213) target = $region44
    $region43: #{wavenet_temporal.1} parent=5 // pred_region
      %s217 = ssub.s32 %s12, 1
      %p218 = scmp.lt.s32.totalorder %s17, 1
      %s219 = scalar_select %p218, %s17, 1
      %s220 = smul.addr %s219, 2
      %s221 = smul.addr %s220, 8
      %s222 = scalar_lea.vmem %s0, %s221
      %p223 = pneg %p38
      %p224 = pneg %p35
      %p225 = pneg %p59
      %p226 = pneg %p56
      %p227 = pneg %p80
      %p228 = pneg %p77
      %p229 = pneg %p101
      %p230 = pneg %p98
      %p231 = pneg %p122
      %p232 = pneg %p119
      %p233 = pneg %p143
      %p234 = pneg %p140
      %p235 = pneg %p169
      %p236 = pneg %p166
      %p237 = scmp.lt.s32.totalorder %s17, 1
      %s238 = scalar_select %p237, %s17, 1
      %s239 = smul.addr %s238, 2
      %s240 = smul.addr %s239, 8
      %s241 = scalar_lea.vmem %s6, %s240
      %p242 = scmp.lt.s32.totalorder %s17, 1
      %s243 = scalar_select %p242, %s17, 1
      %s244 = smul.addr %s243, 2
      %s245 = smul.addr %s244, 8
      %s246 = scalar_lea.vmem %s0, %s245
      %p247 = scmp.lt.s32.totalorder %s17, 1
      %s248 = scalar_select %p247, %s17, 1
      %s249 = smul.addr %s248, 2
      %s250 = smul.addr %s249, 8
      %s251 = scalar_lea.vmem %s6, %s250
      %v253 = vld [vmem:[%s246] sm:$0xff]
      %v254 = vld [vmem:[%s246 + $0x8] sm:$0xff]
      %v255 = vlaneseq
      %v256 = vshrl.u32 %v255, 7
      %v257 = vadd.s32 %v256, 8
      %v258 = vlaneseq
      %v259 = vand.u32 %v258, 127
      %v260 = vadd.s32 %v259, 128
      %vm261 = vcmp.lt.s32.totalorder %v259, 128
      %vm262 = vcmp.lt.s32.totalorder %v260, 128
      %v263 = vsel %vm261, 1.0, 0.5
      %v264 = vsel %vm262, 1.0, 0.5
      %vm265 = vcmp.ge.s32.totalorder %v256, 1
      %vm266 = vcmp.ge.s32.totalorder %v257, 1
      %v267 = vrot.slane %v253, 7
      %v268 = vrot.slane %v254, 7
      %vm269 = vcmp.lt.s32.totalorder %v256, 1
      %v270 = vsel %vm269, %v267, %v268
      %v271 = vsel %vm269, %v268, %v267
      %v272 = vsel %vm265, %v271, 0.0
      %v273 = vsel %vm266, %v270, 0.0
      %v274 = vpack.c.bf16 %v254, %v253
      %v275 = vpack.c.bf16 %v273, %v272
      %v276 = vld [vmem:[%s2] sm:$0xff]
      %v277 = vld [vmem:[%s2 + $0x8] sm:$0xff]
      %v278 = vld [vmem:[%s2 + $0x10] sm:$0xff]
      %v279 = vld [vmem:[%s2 + $0x18] sm:$0xff]
      %v280 = vld [vmem:[%s2 + $0x20] sm:$0xff]
      %v281 = vld [vmem:[%s2 + $0x28] sm:$0xff]
      %v282 = vld [vmem:[%s2 + $0x30] sm:$0xff]
      %v283 = vld [vmem:[%s2 + $0x38] sm:$0xff]
      %v284 = vld [vmem:[%s2 + $0x40] sm:$0xff]
      %v285 = vld [vmem:[%s2 + $0x48] sm:$0xff]
      %v286 = vld [vmem:[%s2 + $0x50] sm:$0xff]
      %v287 = vld [vmem:[%s2 + $0x58] sm:$0xff]
      %v288 = vld [vmem:[%s2 + $0x60] sm:$0xff]
      %v289 = vld [vmem:[%s2 + $0x68] sm:$0xff]
      %v290 = vld [vmem:[%s2 + $0x70] sm:$0xff]
      %v291 = vld [vmem:[%s2 + $0x78] sm:$0xff]
      %v292 = vld [vmem:[%s1] sm:$0xff]
      %v293 = vld [vmem:[%s1 + $0x8] sm:$0xff]
      %v294 = vld [vmem:[%s1 + $0x10] sm:$0xff]
      %v295 = vld [vmem:[%s1 + $0x18] sm:$0xff]
      %v296 = vld [vmem:[%s1 + $0x20] sm:$0xff]
      %v297 = vld [vmem:[%s1 + $0x28] sm:$0xff]
      %v298 = vld [vmem:[%s1 + $0x30] sm:$0xff]
      %v299 = vld [vmem:[%s1 + $0x38] sm:$0xff]
      %v300 = vld [vmem:[%s1 + $0x40] sm:$0xff]
      %v301 = vld [vmem:[%s1 + $0x48] sm:$0xff]
      %v302 = vld [vmem:[%s1 + $0x50] sm:$0xff]
      %v303 = vld [vmem:[%s1 + $0x58] sm:$0xff]
      %v304 = vld [vmem:[%s1 + $0x60] sm:$0xff]
      %v305 = vld [vmem:[%s1 + $0x68] sm:$0xff]
      %v306 = vld [vmem:[%s1 + $0x70] sm:$0xff]
      %v307 = vld [vmem:[%s1 + $0x78] sm:$0xff]
      %v324 = vunpack.c.l.b16 %v292
      %v325 = vunpack.c.h.b16 %v292
      %v326 = vunpack.c.l.b16 %v293
      %v327 = vunpack.c.h.b16 %v293
      %v328 = vunpack.c.l.b16 %v294
      %v329 = vunpack.c.h.b16 %v294
      %v330 = vunpack.c.l.b16 %v295
      %v331 = vunpack.c.h.b16 %v295
      %v332 = vunpack.c.l.b16 %v296
      %v333 = vunpack.c.h.b16 %v296
      %v334 = vunpack.c.l.b16 %v297
      %v335 = vunpack.c.h.b16 %v297
      %v336 = vunpack.c.l.b16 %v298
      %v337 = vunpack.c.h.b16 %v298
      %v338 = vunpack.c.l.b16 %v299
      %v339 = vunpack.c.h.b16 %v299
      %v340 = vunpack.c.l.b16 %v300
      %v341 = vunpack.c.h.b16 %v300
      %v342 = vunpack.c.l.b16 %v301
      %v343 = vunpack.c.h.b16 %v301
      %v344 = vunpack.c.l.b16 %v302
      %v345 = vunpack.c.h.b16 %v302
      %v346 = vunpack.c.l.b16 %v303
      %v347 = vunpack.c.h.b16 %v303
      %v348 = vunpack.c.l.b16 %v304
      %v349 = vunpack.c.h.b16 %v304
      %v350 = vunpack.c.l.b16 %v305
      %v351 = vunpack.c.h.b16 %v305
      %v352 = vunpack.c.l.b16 %v306
      %v353 = vunpack.c.h.b16 %v306
      %v354 = vunpack.c.l.b16 %v307
      %v355 = vunpack.c.h.b16 %v307
      %v356 = vpack.c.b16 %v326, %v324
      %v357 = vpack.c.b16 %v327, %v325
      %v358 = vpack.c.b16 %v330, %v328
      %v359 = vpack.c.b16 %v331, %v329
      %v360 = vpack.c.b16 %v334, %v332
      %v361 = vpack.c.b16 %v335, %v333
      %v362 = vpack.c.b16 %v338, %v336
      %v363 = vpack.c.b16 %v339, %v337
      %v364 = vpack.c.b16 %v342, %v340
      %v365 = vpack.c.b16 %v343, %v341
      %v366 = vpack.c.b16 %v346, %v344
      %v367 = vpack.c.b16 %v347, %v345
      %v368 = vpack.c.b16 %v350, %v348
      %v369 = vpack.c.b16 %v351, %v349
      %v370 = vpack.c.b16 %v354, %v352
      %v371 = vpack.c.b16 %v355, %v353
      %388 = vmatprep.subr.bf16.mxu0 %v371
      %389 = vmatpush1.bf16.msra.mxu0 %v370
      %390 = vmatprep.subr.bf16.mxu0 %v369
      %391 = vmatpush1.bf16.msra.mxu0 %v368
      %392 = vmatprep.subr.bf16.mxu0 %v367
      %393 = vmatpush1.bf16.msra.mxu0 %v366
      %394 = vmatprep.subr.bf16.mxu0 %v365
      %395 = vmatpush1.bf16.msra.mxu0 %v364
      %396 = vmatprep.subr.bf16.mxu0 %v363
      %397 = vmatpush1.bf16.msra.mxu0 %v362
      %398 = vmatprep.subr.bf16.mxu0 %v361
      %399 = vmatpush1.bf16.msra.mxu0 %v360
      %400 = vmatprep.subr.bf16.mxu0 %v359
      %401 = vmatpush1.bf16.msra.mxu0 %v358
      %402 = vmatprep.subr.bf16.mxu0 %v357
      %403 = vmatpush1.bf16.msra.mxu0 %v356
      %404 = vmatprep.subr.bf16.mxu0 0
      %405 = vmatpush2.bf16.msra.mxu0 0
      %406 = vmatprep.subr.bf16.mxu0 0
      %407 = vmatpush2.bf16.msra.mxu0 0
      %408 = vmatprep.subr.bf16.mxu0 0
      %409 = vmatpush2.bf16.msra.mxu0 0
      %410 = vmatprep.subr.bf16.mxu0 0
      %411 = vmatpush2.bf16.msra.mxu0 0
      %412 = vmatprep.subr.bf16.mxu0 0
      %413 = vmatpush2.bf16.msra.mxu0 0
      %414 = vmatprep.subr.bf16.mxu0 0
      %415 = vmatpush2.bf16.msra.mxu0 0
      %416 = vmatprep.subr.bf16.mxu0 0
      %417 = vmatpush2.bf16.msra.mxu0 0
      %418 = vmatprep.subr.bf16.mxu0 0
      %419 = vmatpush2.bf16.msra.mxu0 0
      %420 = vmatprep.mubr.bf16.mxu0 0
      %421 = vmatmul.mubr.bf16.gmra.mxu0 %v275
      %v422 = vpop.f32.mrf.mxu0
      %v423 = vadd.f32 0.0, %v422
      %v424 = vpop.f32.mrf.mxu0
      %v425 = vadd.f32 0.0, %v424
      %v426 = vpop.f32.mrf.mxu0
      %v427 = vadd.f32 0.0, %v426
      %v428 = vpop.f32.mrf.mxu0
      %v429 = vadd.f32 0.0, %v428
      %430 = vdwg.mxu0
      %v447 = vunpack.c.l.b16 %v276
      %v448 = vunpack.c.h.b16 %v276
      %v449 = vunpack.c.l.b16 %v277
      %v450 = vunpack.c.h.b16 %v277
      %v451 = vunpack.c.l.b16 %v278
      %v452 = vunpack.c.h.b16 %v278
      %v453 = vunpack.c.l.b16 %v279
      %v454 = vunpack.c.h.b16 %v279
      %v455 = vunpack.c.l.b16 %v280
      %v456 = vunpack.c.h.b16 %v280
      %v457 = vunpack.c.l.b16 %v281
      %v458 = vunpack.c.h.b16 %v281
      %v459 = vunpack.c.l.b16 %v282
      %v460 = vunpack.c.h.b16 %v282
      %v461 = vunpack.c.l.b16 %v283
      %v462 = vunpack.c.h.b16 %v283
      %v463 = vunpack.c.l.b16 %v284
      %v464 = vunpack.c.h.b16 %v284
      %v465 = vunpack.c.l.b16 %v285
      %v466 = vunpack.c.h.b16 %v285
      %v467 = vunpack.c.l.b16 %v286
      %v468 = vunpack.c.h.b16 %v286
      %v469 = vunpack.c.l.b16 %v287
      %v470 = vunpack.c.h.b16 %v287
      %v471 = vunpack.c.l.b16 %v288
      %v472 = vunpack.c.h.b16 %v288
      %v473 = vunpack.c.l.b16 %v289
      %v474 = vunpack.c.h.b16 %v289
      %v475 = vunpack.c.l.b16 %v290
      %v476 = vunpack.c.h.b16 %v290
      %v477 = vunpack.c.l.b16 %v291
      %v478 = vunpack.c.h.b16 %v291
      %v479 = vpack.c.b16 %v449, %v447
      %v480 = vpack.c.b16 %v450, %v448
      %v481 = vpack.c.b16 %v453, %v451
      %v482 = vpack.c.b16 %v454, %v452
      %v483 = vpack.c.b16 %v457, %v455
      %v484 = vpack.c.b16 %v458, %v456
      %v485 = vpack.c.b16 %v461, %v459
      %v486 = vpack.c.b16 %v462, %v460
      %v487 = vpack.c.b16 %v465, %v463
      %v488 = vpack.c.b16 %v466, %v464
      %v489 = vpack.c.b16 %v469, %v467
      %v490 = vpack.c.b16 %v470, %v468
      %v491 = vpack.c.b16 %v473, %v471
      %v492 = vpack.c.b16 %v474, %v472
      %v493 = vpack.c.b16 %v477, %v475
      %v494 = vpack.c.b16 %v478, %v476
      %511 = vmatprep.subr.bf16.mxu0 %v494
      %512 = vmatpush1.bf16.msra.mxu0 %v493
      %513 = vmatprep.subr.bf16.mxu0 %v492
      %514 = vmatpush1.bf16.msra.mxu0 %v491
      %515 = vmatprep.subr.bf16.mxu0 %v490
      %516 = vmatpush1.bf16.msra.mxu0 %v489
      %517 = vmatprep.subr.bf16.mxu0 %v488
      %518 = vmatpush1.bf16.msra.mxu0 %v487
      %519 = vmatprep.subr.bf16.mxu0 %v486
      %520 = vmatpush1.bf16.msra.mxu0 %v485
      %521 = vmatprep.subr.bf16.mxu0 %v484
      %522 = vmatpush1.bf16.msra.mxu0 %v483
      %523 = vmatprep.subr.bf16.mxu0 %v482
      %524 = vmatpush1.bf16.msra.mxu0 %v481
      %525 = vmatprep.subr.bf16.mxu0 %v480
      %526 = vmatpush1.bf16.msra.mxu0 %v479
      %527 = vmatprep.subr.bf16.mxu0 0
      %528 = vmatpush2.bf16.msra.mxu0 0
      %529 = vmatprep.subr.bf16.mxu0 0
      %530 = vmatpush2.bf16.msra.mxu0 0
      %531 = vmatprep.subr.bf16.mxu0 0
      %532 = vmatpush2.bf16.msra.mxu0 0
      %533 = vmatprep.subr.bf16.mxu0 0
      %534 = vmatpush2.bf16.msra.mxu0 0
      %535 = vmatprep.subr.bf16.mxu0 0
      %536 = vmatpush2.bf16.msra.mxu0 0
      %537 = vmatprep.subr.bf16.mxu0 0
      %538 = vmatpush2.bf16.msra.mxu0 0
      %539 = vmatprep.subr.bf16.mxu0 0
      %540 = vmatpush2.bf16.msra.mxu0 0
      %541 = vmatprep.subr.bf16.mxu0 0
      %542 = vmatpush2.bf16.msra.mxu0 0
      %543 = vmatprep.mubr.bf16.mxu0 0
      %544 = vmatmul.mubr.bf16.gmra.mxu0 %v274
      %v545 = vpop.f32.mrf.mxu0
      %v546 = vadd.f32 %v423, %v545
      %v547 = vpop.f32.mrf.mxu0
      %v548 = vadd.f32 %v425, %v547
      %v549 = vpop.f32.mrf.mxu0
      %v550 = vadd.f32 %v427, %v549
      %v551 = vpop.f32.mrf.mxu0
      %v552 = vadd.f32 %v429, %v551
      %553 = vdwg.mxu0
      %v554 = vld [vmem:[%s3] sm:$0x3]
      %v556 = vlaneseq
      %v557 = vshrl.u32 %v556, 7
      %v558 = vsub.s32 0, %v557
      %v559 = vrot.slane %v554, %v558
      %v560 = vlaneseq
      %v561 = vshrl.u32 %v560, 7
      %v562 = vsub.s32 1, %v561
      %v563 = vrot.slane %v554, %v562
      %v566 = vadd.f32 %v546, %v559
      %v567 = vadd.f32 %v548, %v563
      %v568 = vadd.f32 %v550, %v559
      %v569 = vadd.f32 %v552, %v563
      %v570 = vmul.f32 %v566, %v263
      %v571 = vmul.f32 %v567, %v264
      %v572 = vmul.f32 %v568, %v263
      %v573 = vmul.f32 %v569, %v264
      %v574 = vtanh.pop %v570
      %v575 = vtanh.pop %v571
      %v576 = vtanh.pop %v572
      %v577 = vtanh.pop %v573
      %v578 = vmul.f32 %v575, 0.5
      %v579 = vmul.f32 %v577, 0.5
      %v580 = vadd.f32 %v578, 0.5
      %v581 = vadd.f32 %v579, 0.5
      %v582 = vmul.f32 %v574, %v580
      %v583 = vmul.f32 %v576, %v581
      %v584 = vpack.c.bf16 %v583, %v582
      %v585 = vld [vmem:[%s4] sm:$0xff]
      %v586 = vld [vmem:[%s4 + $0x8] sm:$0xff]
      %v587 = vld [vmem:[%s4 + $0x10] sm:$0xff]
      %v588 = vld [vmem:[%s4 + $0x18] sm:$0xff]
      %v589 = vld [vmem:[%s4 + $0x20] sm:$0xff]
      %v590 = vld [vmem:[%s4 + $0x28] sm:$0xff]
      %v591 = vld [vmem:[%s4 + $0x30] sm:$0xff]
      %v592 = vld [vmem:[%s4 + $0x38] sm:$0xff]
      %v593 = vld [vmem:[%s4 + $0x40] sm:$0xff]
      %v594 = vld [vmem:[%s4 + $0x48] sm:$0xff]
      %v595 = vld [vmem:[%s4 + $0x50] sm:$0xff]
      %v596 = vld [vmem:[%s4 + $0x58] sm:$0xff]
      %v597 = vld [vmem:[%s4 + $0x60] sm:$0xff]
      %v598 = vld [vmem:[%s4 + $0x68] sm:$0xff]
      %v599 = vld [vmem:[%s4 + $0x70] sm:$0xff]
      %v600 = vld [vmem:[%s4 + $0x78] sm:$0xff]
      %v601 = vld [vmem:[%s5] sm:$0x3]
      %v603 = vlaneseq
      %v604 = vshrl.u32 %v603, 7
      %v605 = vsub.s32 0, %v604
      %v606 = vrot.slane %v601, %v605
      %v607 = vlaneseq
      %v608 = vshrl.u32 %v607, 7
      %v609 = vsub.s32 1, %v608
      %v610 = vrot.slane %v601, %v609
      %v629 = vunpack.c.l.b16 %v585
      %v630 = vunpack.c.h.b16 %v585
      %v631 = vunpack.c.l.b16 %v586
      %v632 = vunpack.c.h.b16 %v586
      %v633 = vunpack.c.l.b16 %v587
      %v634 = vunpack.c.h.b16 %v587
      %v635 = vunpack.c.l.b16 %v588
      %v636 = vunpack.c.h.b16 %v588
      %v637 = vunpack.c.l.b16 %v589
      %v638 = vunpack.c.h.b16 %v589
      %v639 = vunpack.c.l.b16 %v590
      %v640 = vunpack.c.h.b16 %v590
      %v641 = vunpack.c.l.b16 %v591
      %v642 = vunpack.c.h.b16 %v591
      %v643 = vunpack.c.l.b16 %v592
      %v644 = vunpack.c.h.b16 %v592
      %v645 = vunpack.c.l.b16 %v593
      %v646 = vunpack.c.h.b16 %v593
      %v647 = vunpack.c.l.b16 %v594
      %v648 = vunpack.c.h.b16 %v594
      %v649 = vunpack.c.l.b16 %v595
      %v650 = vunpack.c.h.b16 %v595
      %v651 = vunpack.c.l.b16 %v596
      %v652 = vunpack.c.h.b16 %v596
      %v653 = vunpack.c.l.b16 %v597
      %v654 = vunpack.c.h.b16 %v597
      %v655 = vunpack.c.l.b16 %v598
      %v656 = vunpack.c.h.b16 %v598
      %v657 = vunpack.c.l.b16 %v599
      %v658 = vunpack.c.h.b16 %v599
      %v659 = vunpack.c.l.b16 %v600
      %v660 = vunpack.c.h.b16 %v600
      %v661 = vpack.c.b16 %v631, %v629
      %v662 = vpack.c.b16 %v632, %v630
      %v663 = vpack.c.b16 %v635, %v633
      %v664 = vpack.c.b16 %v636, %v634
      %v665 = vpack.c.b16 %v639, %v637
      %v666 = vpack.c.b16 %v640, %v638
      %v667 = vpack.c.b16 %v643, %v641
      %v668 = vpack.c.b16 %v644, %v642
      %v669 = vpack.c.b16 %v647, %v645
      %v670 = vpack.c.b16 %v648, %v646
      %v671 = vpack.c.b16 %v651, %v649
      %v672 = vpack.c.b16 %v652, %v650
      %v673 = vpack.c.b16 %v655, %v653
      %v674 = vpack.c.b16 %v656, %v654
      %v675 = vpack.c.b16 %v659, %v657
      %v676 = vpack.c.b16 %v660, %v658
      %693 = vmatprep.subr.bf16.mxu0 %v676
      %694 = vmatpush1.bf16.msra.mxu0 %v675
      %695 = vmatprep.subr.bf16.mxu0 %v674
      %696 = vmatpush1.bf16.msra.mxu0 %v673
      %697 = vmatprep.subr.bf16.mxu0 %v672
      %698 = vmatpush1.bf16.msra.mxu0 %v671
      %699 = vmatprep.subr.bf16.mxu0 %v670
      %700 = vmatpush1.bf16.msra.mxu0 %v669
      %701 = vmatprep.subr.bf16.mxu0 %v668
      %702 = vmatpush1.bf16.msra.mxu0 %v667
      %703 = vmatprep.subr.bf16.mxu0 %v666
      %704 = vmatpush1.bf16.msra.mxu0 %v665
      %705 = vmatprep.subr.bf16.mxu0 %v664
      %706 = vmatpush1.bf16.msra.mxu0 %v663
      %707 = vmatprep.subr.bf16.mxu0 %v662
      %708 = vmatpush1.bf16.msra.mxu0 %v661
      %709 = vmatprep.subr.bf16.mxu0 0
      %710 = vmatpush2.bf16.msra.mxu0 0
      %711 = vmatprep.subr.bf16.mxu0 0
      %712 = vmatpush2.bf16.msra.mxu0 0
      %713 = vmatprep.subr.bf16.mxu0 0
      %714 = vmatpush2.bf16.msra.mxu0 0
      %715 = vmatprep.subr.bf16.mxu0 0
      %716 = vmatpush2.bf16.msra.mxu0 0
      %717 = vmatprep.subr.bf16.mxu0 0
      %718 = vmatpush2.bf16.msra.mxu0 0
      %719 = vmatprep.subr.bf16.mxu0 0
      %720 = vmatpush2.bf16.msra.mxu0 0
      %721 = vmatprep.subr.bf16.mxu0 0
      %722 = vmatpush2.bf16.msra.mxu0 0
      %723 = vmatprep.subr.bf16.mxu0 0
      %724 = vmatpush2.bf16.msra.mxu0 0
      %725 = vmatprep.mubr.bf16.mxu0 0
      %726 = vmatmul.mubr.bf16.gmra.mxu0 %v584
      %v727 = vpop.f32.mrf.mxu0
      %v728 = vadd.f32 %v606, %v727
      %v729 = vpop.f32.mrf.mxu0
      %v730 = vadd.f32 %v610, %v729
      %v731 = vpop.f32.mrf.mxu0
      %v732 = vadd.f32 %v606, %v731
      %v733 = vpop.f32.mrf.mxu0
      %v734 = vadd.f32 %v610, %v733
      %735 = vdwg.mxu0
      %v736 = vadd.f32 %v728, 0.0
      %v737 = vadd.f32 %v732, 0.0
      %v738 = vadd.f32 %v730, %v253
      %v739 = vadd.f32 %v734, %v254
      %vm740 = vcmp.ge.s32.totalorder %v256, 2
      %vm741 = vcmp.ge.s32.totalorder %v257, 2
      %v742 = vrot.slane %v738, 6
      %v743 = vrot.slane %v739, 6
      %vm744 = vcmp.lt.s32.totalorder %v256, 2
      %v745 = vsel %vm744, %v742, %v743
      %v746 = vsel %vm744, %v743, %v742
      %v747 = vsel %vm740, %v746, 0.0
      %v748 = vsel %vm741, %v745, 0.0
      %v749 = vpack.c.bf16 %v739, %v738
      %v750 = vpack.c.bf16 %v748, %v747
      %s751 = scalar_lea.vmem %s2, 128
      %v752 = vld [vmem:[%s751] sm:$0xff]
      %v753 = vld [vmem:[%s751 + $0x8] sm:$0xff]
      %v754 = vld [vmem:[%s751 + $0x10] sm:$0xff]
      %v755 = vld [vmem:[%s751 + $0x18] sm:$0xff]
      %v756 = vld [vmem:[%s751 + $0x20] sm:$0xff]
      %v757 = vld [vmem:[%s751 + $0x28] sm:$0xff]
      %v758 = vld [vmem:[%s751 + $0x30] sm:$0xff]
      %v759 = vld [vmem:[%s751 + $0x38] sm:$0xff]
      %v760 = vld [vmem:[%s751 + $0x40] sm:$0xff]
      %v761 = vld [vmem:[%s751 + $0x48] sm:$0xff]
      %v762 = vld [vmem:[%s751 + $0x50] sm:$0xff]
      %v763 = vld [vmem:[%s751 + $0x58] sm:$0xff]
      %v764 = vld [vmem:[%s751 + $0x60] sm:$0xff]
      %v765 = vld [vmem:[%s751 + $0x68] sm:$0xff]
      %v766 = vld [vmem:[%s751 + $0x70] sm:$0xff]
      %v767 = vld [vmem:[%s751 + $0x78] sm:$0xff]
      %s768 = scalar_lea.vmem %s1, 128
      %v769 = vld [vmem:[%s768] sm:$0xff]
      %v770 = vld [vmem:[%s768 + $0x8] sm:$0xff]
      %v771 = vld [vmem:[%s768 + $0x10] sm:$0xff]
      %v772 = vld [vmem:[%s768 + $0x18] sm:$0xff]
      %v773 = vld [vmem:[%s768 + $0x20] sm:$0xff]
      %v774 = vld [vmem:[%s768 + $0x28] sm:$0xff]
      %v775 = vld [vmem:[%s768 + $0x30] sm:$0xff]
      %v776 = vld [vmem:[%s768 + $0x38] sm:$0xff]
      %v777 = vld [vmem:[%s768 + $0x40] sm:$0xff]
      %v778 = vld [vmem:[%s768 + $0x48] sm:$0xff]
      %v779 = vld [vmem:[%s768 + $0x50] sm:$0xff]
      %v780 = vld [vmem:[%s768 + $0x58] sm:$0xff]
      %v781 = vld [vmem:[%s768 + $0x60] sm:$0xff]
      %v782 = vld [vmem:[%s768 + $0x68] sm:$0xff]
      %v783 = vld [vmem:[%s768 + $0x70] sm:$0xff]
      %v784 = vld [vmem:[%s768 + $0x78] sm:$0xff]
      %v801 = vunpack.c.l.b16 %v769
      %v802 = vunpack.c.h.b16 %v769
      %v803 = vunpack.c.l.b16 %v770
      %v804 = vunpack.c.h.b16 %v770
      %v805 = vunpack.c.l.b16 %v771
      %v806 = vunpack.c.h.b16 %v771
      %v807 = vunpack.c.l.b16 %v772
      %v808 = vunpack.c.h.b16 %v772
      %v809 = vunpack.c.l.b16 %v773
      %v810 = vunpack.c.h.b16 %v773
      %v811 = vunpack.c.l.b16 %v774
      %v812 = vunpack.c.h.b16 %v774
      %v813 = vunpack.c.l.b16 %v775
      %v814 = vunpack.c.h.b16 %v775
      %v815 = vunpack.c.l.b16 %v776
      %v816 = vunpack.c.h.b16 %v776
      %v817 = vunpack.c.l.b16 %v777
      %v818 = vunpack.c.h.b16 %v777
      %v819 = vunpack.c.l.b16 %v778
      %v820 = vunpack.c.h.b16 %v778
      %v821 = vunpack.c.l.b16 %v779
      %v822 = vunpack.c.h.b16 %v779
      %v823 = vunpack.c.l.b16 %v780
      %v824 = vunpack.c.h.b16 %v780
      %v825 = vunpack.c.l.b16 %v781
      %v826 = vunpack.c.h.b16 %v781
      %v827 = vunpack.c.l.b16 %v782
      %v828 = vunpack.c.h.b16 %v782
      %v829 = vunpack.c.l.b16 %v783
      %v830 = vunpack.c.h.b16 %v783
      %v831 = vunpack.c.l.b16 %v784
      %v832 = vunpack.c.h.b16 %v784
      %v833 = vpack.c.b16 %v803, %v801
      %v834 = vpack.c.b16 %v804, %v802
      %v835 = vpack.c.b16 %v807, %v805
      %v836 = vpack.c.b16 %v808, %v806
      %v837 = vpack.c.b16 %v811, %v809
      %v838 = vpack.c.b16 %v812, %v810
      %v839 = vpack.c.b16 %v815, %v813
      %v840 = vpack.c.b16 %v816, %v814
      %v841 = vpack.c.b16 %v819, %v817
      %v842 = vpack.c.b16 %v820, %v818
      %v843 = vpack.c.b16 %v823, %v821
      %v844 = vpack.c.b16 %v824, %v822
      %v845 = vpack.c.b16 %v827, %v825
      %v846 = vpack.c.b16 %v828, %v826
      %v847 = vpack.c.b16 %v831, %v829
      %v848 = vpack.c.b16 %v832, %v830
      %865 = vmatprep.subr.bf16.mxu0 %v848
      %866 = vmatpush1.bf16.msra.mxu0 %v847
      %867 = vmatprep.subr.bf16.mxu0 %v846
      %868 = vmatpush1.bf16.msra.mxu0 %v845
      %869 = vmatprep.subr.bf16.mxu0 %v844
      %870 = vmatpush1.bf16.msra.mxu0 %v843
      %871 = vmatprep.subr.bf16.mxu0 %v842
      %872 = vmatpush1.bf16.msra.mxu0 %v841
      %873 = vmatprep.subr.bf16.mxu0 %v840
      %874 = vmatpush1.bf16.msra.mxu0 %v839
      %875 = vmatprep.subr.bf16.mxu0 %v838
      %876 = vmatpush1.bf16.msra.mxu0 %v837
      %877 = vmatprep.subr.bf16.mxu0 %v836
      %878 = vmatpush1.bf16.msra.mxu0 %v835
      %879 = vmatprep.subr.bf16.mxu0 %v834
      %880 = vmatpush1.bf16.msra.mxu0 %v833
      %881 = vmatprep.subr.bf16.mxu0 0
      %882 = vmatpush2.bf16.msra.mxu0 0
      %883 = vmatprep.subr.bf16.mxu0 0
      %884 = vmatpush2.bf16.msra.mxu0 0
      %885 = vmatprep.subr.bf16.mxu0 0
      %886 = vmatpush2.bf16.msra.mxu0 0
      %887 = vmatprep.subr.bf16.mxu0 0
      %888 = vmatpush2.bf16.msra.mxu0 0
      %889 = vmatprep.subr.bf16.mxu0 0
      %890 = vmatpush2.bf16.msra.mxu0 0
      %891 = vmatprep.subr.bf16.mxu0 0
      %892 = vmatpush2.bf16.msra.mxu0 0
      %893 = vmatprep.subr.bf16.mxu0 0
      %894 = vmatpush2.bf16.msra.mxu0 0
      %895 = vmatprep.subr.bf16.mxu0 0
      %896 = vmatpush2.bf16.msra.mxu0 0
      %897 = vmatprep.mubr.bf16.mxu0 0
      %898 = vmatmul.mubr.bf16.gmra.mxu0 %v750
      %v899 = vpop.f32.mrf.mxu0
      %v900 = vadd.f32 0.0, %v899
      %v901 = vpop.f32.mrf.mxu0
      %v902 = vadd.f32 0.0, %v901
      %v903 = vpop.f32.mrf.mxu0
      %v904 = vadd.f32 0.0, %v903
      %v905 = vpop.f32.mrf.mxu0
      %v906 = vadd.f32 0.0, %v905
      %907 = vdwg.mxu0
      %v924 = vunpack.c.l.b16 %v752
      %v925 = vunpack.c.h.b16 %v752
      %v926 = vunpack.c.l.b16 %v753
      %v927 = vunpack.c.h.b16 %v753
      %v928 = vunpack.c.l.b16 %v754
      %v929 = vunpack.c.h.b16 %v754
      %v930 = vunpack.c.l.b16 %v755
      %v931 = vunpack.c.h.b16 %v755
      %v932 = vunpack.c.l.b16 %v756
      %v933 = vunpack.c.h.b16 %v756
      %v934 = vunpack.c.l.b16 %v757
      %v935 = vunpack.c.h.b16 %v757
      %v936 = vunpack.c.l.b16 %v758
      %v937 = vunpack.c.h.b16 %v758
      %v938 = vunpack.c.l.b16 %v759
      %v939 = vunpack.c.h.b16 %v759
      %v940 = vunpack.c.l.b16 %v760
      %v941 = vunpack.c.h.b16 %v760
      %v942 = vunpack.c.l.b16 %v761
      %v943 = vunpack.c.h.b16 %v761
      %v944 = vunpack.c.l.b16 %v762
      %v945 = vunpack.c.h.b16 %v762
      %v946 = vunpack.c.l.b16 %v763
      %v947 = vunpack.c.h.b16 %v763
      %v948 = vunpack.c.l.b16 %v764
      %v949 = vunpack.c.h.b16 %v764
      %v950 = vunpack.c.l.b16 %v765
      %v951 = vunpack.c.h.b16 %v765
      %v952 = vunpack.c.l.b16 %v766
      %v953 = vunpack.c.h.b16 %v766
      %v954 = vunpack.c.l.b16 %v767
      %v955 = vunpack.c.h.b16 %v767
      %v956 = vpack.c.b16 %v926, %v924
      %v957 = vpack.c.b16 %v927, %v925
      %v958 = vpack.c.b16 %v930, %v928
      %v959 = vpack.c.b16 %v931, %v929
      %v960 = vpack.c.b16 %v934, %v932
      %v961 = vpack.c.b16 %v935, %v933
      %v962 = vpack.c.b16 %v938, %v936
      %v963 = vpack.c.b16 %v939, %v937
      %v964 = vpack.c.b16 %v942, %v940
      %v965 = vpack.c.b16 %v943, %v941
      %v966 = vpack.c.b16 %v946, %v944
      %v967 = vpack.c.b16 %v947, %v945
      %v968 = vpack.c.b16 %v950, %v948
      %v969 = vpack.c.b16 %v951, %v949
      %v970 = vpack.c.b16 %v954, %v952
      %v971 = vpack.c.b16 %v955, %v953
      %988 = vmatprep.subr.bf16.mxu0 %v971
      %989 = vmatpush1.bf16.msra.mxu0 %v970
      %990 = vmatprep.subr.bf16.mxu0 %v969
      %991 = vmatpush1.bf16.msra.mxu0 %v968
      %992 = vmatprep.subr.bf16.mxu0 %v967
      %993 = vmatpush1.bf16.msra.mxu0 %v966
      %994 = vmatprep.subr.bf16.mxu0 %v965
      %995 = vmatpush1.bf16.msra.mxu0 %v964
      %996 = vmatprep.subr.bf16.mxu0 %v963
      %997 = vmatpush1.bf16.msra.mxu0 %v962
      %998 = vmatprep.subr.bf16.mxu0 %v961
      %999 = vmatpush1.bf16.msra.mxu0 %v960
      %1000 = vmatprep.subr.bf16.mxu0 %v959
      %1001 = vmatpush1.bf16.msra.mxu0 %v958
      %1002 = vmatprep.subr.bf16.mxu0 %v957
      %1003 = vmatpush1.bf16.msra.mxu0 %v956
      %1004 = vmatprep.subr.bf16.mxu0 0
      %1005 = vmatpush2.bf16.msra.mxu0 0
      %1006 = vmatprep.subr.bf16.mxu0 0
      %1007 = vmatpush2.bf16.msra.mxu0 0
      %1008 = vmatprep.subr.bf16.mxu0 0
      %1009 = vmatpush2.bf16.msra.mxu0 0
      %1010 = vmatprep.subr.bf16.mxu0 0
      %1011 = vmatpush2.bf16.msra.mxu0 0
      %1012 = vmatprep.subr.bf16.mxu0 0
      %1013 = vmatpush2.bf16.msra.mxu0 0
      %1014 = vmatprep.subr.bf16.mxu0 0
      %1015 = vmatpush2.bf16.msra.mxu0 0
      %1016 = vmatprep.subr.bf16.mxu0 0
      %1017 = vmatpush2.bf16.msra.mxu0 0
      %1018 = vmatprep.subr.bf16.mxu0 0
      %1019 = vmatpush2.bf16.msra.mxu0 0
      %1020 = vmatprep.mubr.bf16.mxu0 0
      %1021 = vmatmul.mubr.bf16.gmra.mxu0 %v749
      %v1022 = vpop.f32.mrf.mxu0
      %v1023 = vadd.f32 %v900, %v1022
      %v1024 = vpop.f32.mrf.mxu0
      %v1025 = vadd.f32 %v902, %v1024
      %v1026 = vpop.f32.mrf.mxu0
      %v1027 = vadd.f32 %v904, %v1026
      %v1028 = vpop.f32.mrf.mxu0
      %v1029 = vadd.f32 %v906, %v1028
      %1030 = vdwg.mxu0
      %s1031 = scalar_lea.vmem %s3, 2
      %v1032 = vld [vmem:[%s1031] sm:$0x3]
      %v1034 = vlaneseq
      %v1035 = vshrl.u32 %v1034, 7
      %v1036 = vsub.s32 0, %v1035
      %v1037 = vrot.slane %v1032, %v1036
      %v1038 = vlaneseq
      %v1039 = vshrl.u32 %v1038, 7
      %v1040 = vsub.s32 1, %v1039
      %v1041 = vrot.slane %v1032, %v1040
      %v1044 = vadd.f32 %v1023, %v1037
      %v1045 = vadd.f32 %v1025, %v1041
      %v1046 = vadd.f32 %v1027, %v1037
      %v1047 = vadd.f32 %v1029, %v1041
      %v1048 = vmul.f32 %v1044, %v263
      %v1049 = vmul.f32 %v1045, %v264
      %v1050 = vmul.f32 %v1046, %v263
      %v1051 = vmul.f32 %v1047, %v264
      %v1052 = vtanh.pop %v1048
      %v1053 = vtanh.pop %v1049
      %v1054 = vtanh.pop %v1050
      %v1055 = vtanh.pop %v1051
      %v1056 = vmul.f32 %v1053, 0.5
      %v1057 = vmul.f32 %v1055, 0.5
      %v1058 = vadd.f32 %v1056, 0.5
      %v1059 = vadd.f32 %v1057, 0.5
      %v1060 = vmul.f32 %v1052, %v1058
      %v1061 = vmul.f32 %v1054, %v1059
      %v1062 = vpack.c.bf16 %v1061, %v1060
      %s1063 = scalar_lea.vmem %s4, 128
      %v1064 = vld [vmem:[%s1063] sm:$0xff]
      %v1065 = vld [vmem:[%s1063 + $0x8] sm:$0xff]
      %v1066 = vld [vmem:[%s1063 + $0x10] sm:$0xff]
      %v1067 = vld [vmem:[%s1063 + $0x18] sm:$0xff]
      %v1068 = vld [vmem:[%s1063 + $0x20] sm:$0xff]
      %v1069 = vld [vmem:[%s1063 + $0x28] sm:$0xff]
      %v1070 = vld [vmem:[%s1063 + $0x30] sm:$0xff]
      %v1071 = vld [vmem:[%s1063 + $0x38] sm:$0xff]
      %v1072 = vld [vmem:[%s1063 + $0x40] sm:$0xff]
      %v1073 = vld [vmem:[%s1063 + $0x48] sm:$0xff]
      %v1074 = vld [vmem:[%s1063 + $0x50] sm:$0xff]
      %v1075 = vld [vmem:[%s1063 + $0x58] sm:$0xff]
      %v1076 = vld [vmem:[%s1063 + $0x60] sm:$0xff]
      %v1077 = vld [vmem:[%s1063 + $0x68] sm:$0xff]
      %v1078 = vld [vmem:[%s1063 + $0x70] sm:$0xff]
      %v1079 = vld [vmem:[%s1063 + $0x78] sm:$0xff]
      %s1080 = scalar_lea.vmem %s5, 2
      %v1081 = vld [vmem:[%s1080] sm:$0x3]
      %v1083 = vlaneseq
      %v1084 = vshrl.u32 %v1083, 7
      %v1085 = vsub.s32 0, %v1084
      %v1086 = vrot.slane %v1081, %v1085
      %v1087 = vlaneseq
      %v1088 = vshrl.u32 %v1087, 7
      %v1089 = vsub.s32 1, %v1088
      %v1090 = vrot.slane %v1081, %v1089
      %v1109 = vunpack.c.l.b16 %v1064
      %v1110 = vunpack.c.h.b16 %v1064
      %v1111 = vunpack.c.l.b16 %v1065
      %v1112 = vunpack.c.h.b16 %v1065
      %v1113 = vunpack.c.l.b16 %v1066
      %v1114 = vunpack.c.h.b16 %v1066
      %v1115 = vunpack.c.l.b16 %v1067
      %v1116 = vunpack.c.h.b16 %v1067
      %v1117 = vunpack.c.l.b16 %v1068
      %v1118 = vunpack.c.h.b16 %v1068
      %v1119 = vunpack.c.l.b16 %v1069
      %v1120 = vunpack.c.h.b16 %v1069
      %v1121 = vunpack.c.l.b16 %v1070
      %v1122 = vunpack.c.h.b16 %v1070
      %v1123 = vunpack.c.l.b16 %v1071
      %v1124 = vunpack.c.h.b16 %v1071
      %v1125 = vunpack.c.l.b16 %v1072
      %v1126 = vunpack.c.h.b16 %v1072
      %v1127 = vunpack.c.l.b16 %v1073
      %v1128 = vunpack.c.h.b16 %v1073
      %v1129 = vunpack.c.l.b16 %v1074
      %v1130 = vunpack.c.h.b16 %v1074
      %v1131 = vunpack.c.l.b16 %v1075
      %v1132 = vunpack.c.h.b16 %v1075
      %v1133 = vunpack.c.l.b16 %v1076
      %v1134 = vunpack.c.h.b16 %v1076
      %v1135 = vunpack.c.l.b16 %v1077
      %v1136 = vunpack.c.h.b16 %v1077
      %v1137 = vunpack.c.l.b16 %v1078
      %v1138 = vunpack.c.h.b16 %v1078
      %v1139 = vunpack.c.l.b16 %v1079
      %v1140 = vunpack.c.h.b16 %v1079
      %v1141 = vpack.c.b16 %v1111, %v1109
      %v1142 = vpack.c.b16 %v1112, %v1110
      %v1143 = vpack.c.b16 %v1115, %v1113
      %v1144 = vpack.c.b16 %v1116, %v1114
      %v1145 = vpack.c.b16 %v1119, %v1117
      %v1146 = vpack.c.b16 %v1120, %v1118
      %v1147 = vpack.c.b16 %v1123, %v1121
      %v1148 = vpack.c.b16 %v1124, %v1122
      %v1149 = vpack.c.b16 %v1127, %v1125
      %v1150 = vpack.c.b16 %v1128, %v1126
      %v1151 = vpack.c.b16 %v1131, %v1129
      %v1152 = vpack.c.b16 %v1132, %v1130
      %v1153 = vpack.c.b16 %v1135, %v1133
      %v1154 = vpack.c.b16 %v1136, %v1134
      %v1155 = vpack.c.b16 %v1139, %v1137
      %v1156 = vpack.c.b16 %v1140, %v1138
      %1173 = vmatprep.subr.bf16.mxu0 %v1156
      %1174 = vmatpush1.bf16.msra.mxu0 %v1155
      %1175 = vmatprep.subr.bf16.mxu0 %v1154
      %1176 = vmatpush1.bf16.msra.mxu0 %v1153
      %1177 = vmatprep.subr.bf16.mxu0 %v1152
      %1178 = vmatpush1.bf16.msra.mxu0 %v1151
      %1179 = vmatprep.subr.bf16.mxu0 %v1150
      %1180 = vmatpush1.bf16.msra.mxu0 %v1149
      %1181 = vmatprep.subr.bf16.mxu0 %v1148
      %1182 = vmatpush1.bf16.msra.mxu0 %v1147
      %1183 = vmatprep.subr.bf16.mxu0 %v1146
      %1184 = vmatpush1.bf16.msra.mxu0 %v1145
      %1185 = vmatprep.subr.bf16.mxu0 %v1144
      %1186 = vmatpush1.bf16.msra.mxu0 %v1143
      %1187 = vmatprep.subr.bf16.mxu0 %v1142
      %1188 = vmatpush1.bf16.msra.mxu0 %v1141
      %1189 = vmatprep.subr.bf16.mxu0 0
      %1190 = vmatpush2.bf16.msra.mxu0 0
      %1191 = vmatprep.subr.bf16.mxu0 0
      %1192 = vmatpush2.bf16.msra.mxu0 0
      %1193 = vmatprep.subr.bf16.mxu0 0
      %1194 = vmatpush2.bf16.msra.mxu0 0
      %1195 = vmatprep.subr.bf16.mxu0 0
      %1196 = vmatpush2.bf16.msra.mxu0 0
      %1197 = vmatprep.subr.bf16.mxu0 0
      %1198 = vmatpush2.bf16.msra.mxu0 0
      %1199 = vmatprep.subr.bf16.mxu0 0
      %1200 = vmatpush2.bf16.msra.mxu0 0
      %1201 = vmatprep.subr.bf16.mxu0 0
      %1202 = vmatpush2.bf16.msra.mxu0 0
      %1203 = vmatprep.subr.bf16.mxu0 0
      %1204 = vmatpush2.bf16.msra.mxu0 0
      %1205 = vmatprep.mubr.bf16.mxu0 0
      %1206 = vmatmul.mubr.bf16.gmra.mxu0 %v1062
      %v1207 = vpop.f32.mrf.mxu0
      %v1208 = vadd.f32 %v1086, %v1207
      %v1209 = vpop.f32.mrf.mxu0
      %v1210 = vadd.f32 %v1090, %v1209
      %v1211 = vpop.f32.mrf.mxu0
      %v1212 = vadd.f32 %v1086, %v1211
      %v1213 = vpop.f32.mrf.mxu0
      %v1214 = vadd.f32 %v1090, %v1213
      %1215 = vdwg.mxu0
      %v1216 = vadd.f32 %v736, %v1208
      %v1217 = vadd.f32 %v737, %v1212
      %v1218 = vadd.f32 %v1210, %v738
      %v1219 = vadd.f32 %v1214, %v739
      %vm1220 = vcmp.ge.s32.totalorder %v256, 4
      %vm1221 = vcmp.ge.s32.totalorder %v257, 4
      %v1222 = vrot.slane %v1218, 4
      %v1223 = vrot.slane %v1219, 4
      %vm1224 = vcmp.lt.s32.totalorder %v256, 4
      %v1225 = vsel %vm1224, %v1222, %v1223
      %v1226 = vsel %vm1224, %v1223, %v1222
      %v1227 = vsel %vm1220, %v1226, 0.0
      %v1228 = vsel %vm1221, %v1225, 0.0
      %v1229 = vpack.c.bf16 %v1219, %v1218
      %v1230 = vpack.c.bf16 %v1228, %v1227
      %s1231 = scalar_lea.vmem %s2, 256
      %v1232 = vld [vmem:[%s1231] sm:$0xff]
      %v1233 = vld [vmem:[%s1231 + $0x8] sm:$0xff]
      %v1234 = vld [vmem:[%s1231 + $0x10] sm:$0xff]
      %v1235 = vld [vmem:[%s1231 + $0x18] sm:$0xff]
      %v1236 = vld [vmem:[%s1231 + $0x20] sm:$0xff]
      %v1237 = vld [vmem:[%s1231 + $0x28] sm:$0xff]
      %v1238 = vld [vmem:[%s1231 + $0x30] sm:$0xff]
      %v1239 = vld [vmem:[%s1231 + $0x38] sm:$0xff]
      %v1240 = vld [vmem:[%s1231 + $0x40] sm:$0xff]
      %v1241 = vld [vmem:[%s1231 + $0x48] sm:$0xff]
      %v1242 = vld [vmem:[%s1231 + $0x50] sm:$0xff]
      %v1243 = vld [vmem:[%s1231 + $0x58] sm:$0xff]
      %v1244 = vld [vmem:[%s1231 + $0x60] sm:$0xff]
      %v1245 = vld [vmem:[%s1231 + $0x68] sm:$0xff]
      %v1246 = vld [vmem:[%s1231 + $0x70] sm:$0xff]
      %v1247 = vld [vmem:[%s1231 + $0x78] sm:$0xff]
      %s1248 = scalar_lea.vmem %s1, 256
      %v1249 = vld [vmem:[%s1248] sm:$0xff]
      %v1250 = vld [vmem:[%s1248 + $0x8] sm:$0xff]
      %v1251 = vld [vmem:[%s1248 + $0x10] sm:$0xff]
      %v1252 = vld [vmem:[%s1248 + $0x18] sm:$0xff]
      %v1253 = vld [vmem:[%s1248 + $0x20] sm:$0xff]
      %v1254 = vld [vmem:[%s1248 + $0x28] sm:$0xff]
      %v1255 = vld [vmem:[%s1248 + $0x30] sm:$0xff]
      %v1256 = vld [vmem:[%s1248 + $0x38] sm:$0xff]
      %v1257 = vld [vmem:[%s1248 + $0x40] sm:$0xff]
      %v1258 = vld [vmem:[%s1248 + $0x48] sm:$0xff]
      %v1259 = vld [vmem:[%s1248 + $0x50] sm:$0xff]
      %v1260 = vld [vmem:[%s1248 + $0x58] sm:$0xff]
      %v1261 = vld [vmem:[%s1248 + $0x60] sm:$0xff]
      %v1262 = vld [vmem:[%s1248 + $0x68] sm:$0xff]
      %v1263 = vld [vmem:[%s1248 + $0x70] sm:$0xff]
      %v1264 = vld [vmem:[%s1248 + $0x78] sm:$0xff]
      %v1281 = vunpack.c.l.b16 %v1249
      %v1282 = vunpack.c.h.b16 %v1249
      %v1283 = vunpack.c.l.b16 %v1250
      %v1284 = vunpack.c.h.b16 %v1250
      %v1285 = vunpack.c.l.b16 %v1251
      %v1286 = vunpack.c.h.b16 %v1251
      %v1287 = vunpack.c.l.b16 %v1252
      %v1288 = vunpack.c.h.b16 %v1252
      %v1289 = vunpack.c.l.b16 %v1253
      %v1290 = vunpack.c.h.b16 %v1253
      %v1291 = vunpack.c.l.b16 %v1254
      %v1292 = vunpack.c.h.b16 %v1254
      %v1293 = vunpack.c.l.b16 %v1255
      %v1294 = vunpack.c.h.b16 %v1255
      %v1295 = vunpack.c.l.b16 %v1256
      %v1296 = vunpack.c.h.b16 %v1256
      %v1297 = vunpack.c.l.b16 %v1257
      %v1298 = vunpack.c.h.b16 %v1257
      %v1299 = vunpack.c.l.b16 %v1258
      %v1300 = vunpack.c.h.b16 %v1258
      %v1301 = vunpack.c.l.b16 %v1259
      %v1302 = vunpack.c.h.b16 %v1259
      %v1303 = vunpack.c.l.b16 %v1260
      %v1304 = vunpack.c.h.b16 %v1260
      %v1305 = vunpack.c.l.b16 %v1261
      %v1306 = vunpack.c.h.b16 %v1261
      %v1307 = vunpack.c.l.b16 %v1262
      %v1308 = vunpack.c.h.b16 %v1262
      %v1309 = vunpack.c.l.b16 %v1263
      %v1310 = vunpack.c.h.b16 %v1263
      %v1311 = vunpack.c.l.b16 %v1264
      %v1312 = vunpack.c.h.b16 %v1264
      %v1313 = vpack.c.b16 %v1283, %v1281
      %v1314 = vpack.c.b16 %v1284, %v1282
      %v1315 = vpack.c.b16 %v1287, %v1285
      %v1316 = vpack.c.b16 %v1288, %v1286
      %v1317 = vpack.c.b16 %v1291, %v1289
      %v1318 = vpack.c.b16 %v1292, %v1290
      %v1319 = vpack.c.b16 %v1295, %v1293
      %v1320 = vpack.c.b16 %v1296, %v1294
      %v1321 = vpack.c.b16 %v1299, %v1297
      %v1322 = vpack.c.b16 %v1300, %v1298
      %v1323 = vpack.c.b16 %v1303, %v1301
      %v1324 = vpack.c.b16 %v1304, %v1302
      %v1325 = vpack.c.b16 %v1307, %v1305
      %v1326 = vpack.c.b16 %v1308, %v1306
      %v1327 = vpack.c.b16 %v1311, %v1309
      %v1328 = vpack.c.b16 %v1312, %v1310
      %1345 = vmatprep.subr.bf16.mxu0 %v1328
      %1346 = vmatpush1.bf16.msra.mxu0 %v1327
      %1347 = vmatprep.subr.bf16.mxu0 %v1326
      %1348 = vmatpush1.bf16.msra.mxu0 %v1325
      %1349 = vmatprep.subr.bf16.mxu0 %v1324
      %1350 = vmatpush1.bf16.msra.mxu0 %v1323
      %1351 = vmatprep.subr.bf16.mxu0 %v1322
      %1352 = vmatpush1.bf16.msra.mxu0 %v1321
      %1353 = vmatprep.subr.bf16.mxu0 %v1320
      %1354 = vmatpush1.bf16.msra.mxu0 %v1319
      %1355 = vmatprep.subr.bf16.mxu0 %v1318
      %1356 = vmatpush1.bf16.msra.mxu0 %v1317
      %1357 = vmatprep.subr.bf16.mxu0 %v1316
      %1358 = vmatpush1.bf16.msra.mxu0 %v1315
      %1359 = vmatprep.subr.bf16.mxu0 %v1314
      %1360 = vmatpush1.bf16.msra.mxu0 %v1313
      %1361 = vmatprep.subr.bf16.mxu0 0
      %1362 = vmatpush2.bf16.msra.mxu0 0
      %1363 = vmatprep.subr.bf16.mxu0 0
      %1364 = vmatpush2.bf16.msra.mxu0 0
      %1365 = vmatprep.subr.bf16.mxu0 0
      %1366 = vmatpush2.bf16.msra.mxu0 0
      %1367 = vmatprep.subr.bf16.mxu0 0
      %1368 = vmatpush2.bf16.msra.mxu0 0
      %1369 = vmatprep.subr.bf16.mxu0 0
      %1370 = vmatpush2.bf16.msra.mxu0 0
      %1371 = vmatprep.subr.bf16.mxu0 0
      %1372 = vmatpush2.bf16.msra.mxu0 0
      %1373 = vmatprep.subr.bf16.mxu0 0
      %1374 = vmatpush2.bf16.msra.mxu0 0
      %1375 = vmatprep.subr.bf16.mxu0 0
      %1376 = vmatpush2.bf16.msra.mxu0 0
      %1377 = vmatprep.mubr.bf16.mxu0 0
      %1378 = vmatmul.mubr.bf16.gmra.mxu0 %v1230
      %v1379 = vpop.f32.mrf.mxu0
      %v1380 = vadd.f32 0.0, %v1379
      %v1381 = vpop.f32.mrf.mxu0
      %v1382 = vadd.f32 0.0, %v1381
      %v1383 = vpop.f32.mrf.mxu0
      %v1384 = vadd.f32 0.0, %v1383
      %v1385 = vpop.f32.mrf.mxu0
      %v1386 = vadd.f32 0.0, %v1385
      %1387 = vdwg.mxu0
      %v1404 = vunpack.c.l.b16 %v1232
      %v1405 = vunpack.c.h.b16 %v1232
      %v1406 = vunpack.c.l.b16 %v1233
      %v1407 = vunpack.c.h.b16 %v1233
      %v1408 = vunpack.c.l.b16 %v1234
      %v1409 = vunpack.c.h.b16 %v1234
      %v1410 = vunpack.c.l.b16 %v1235
      %v1411 = vunpack.c.h.b16 %v1235
      %v1412 = vunpack.c.l.b16 %v1236
      %v1413 = vunpack.c.h.b16 %v1236
      %v1414 = vunpack.c.l.b16 %v1237
      %v1415 = vunpack.c.h.b16 %v1237
      %v1416 = vunpack.c.l.b16 %v1238
      %v1417 = vunpack.c.h.b16 %v1238
      %v1418 = vunpack.c.l.b16 %v1239
      %v1419 = vunpack.c.h.b16 %v1239
      %v1420 = vunpack.c.l.b16 %v1240
      %v1421 = vunpack.c.h.b16 %v1240
      %v1422 = vunpack.c.l.b16 %v1241
      %v1423 = vunpack.c.h.b16 %v1241
      %v1424 = vunpack.c.l.b16 %v1242
      %v1425 = vunpack.c.h.b16 %v1242
      %v1426 = vunpack.c.l.b16 %v1243
      %v1427 = vunpack.c.h.b16 %v1243
      %v1428 = vunpack.c.l.b16 %v1244
      %v1429 = vunpack.c.h.b16 %v1244
      %v1430 = vunpack.c.l.b16 %v1245
      %v1431 = vunpack.c.h.b16 %v1245
      %v1432 = vunpack.c.l.b16 %v1246
      %v1433 = vunpack.c.h.b16 %v1246
      %v1434 = vunpack.c.l.b16 %v1247
      %v1435 = vunpack.c.h.b16 %v1247
      %v1436 = vpack.c.b16 %v1406, %v1404
      %v1437 = vpack.c.b16 %v1407, %v1405
      %v1438 = vpack.c.b16 %v1410, %v1408
      %v1439 = vpack.c.b16 %v1411, %v1409
      %v1440 = vpack.c.b16 %v1414, %v1412
      %v1441 = vpack.c.b16 %v1415, %v1413
      %v1442 = vpack.c.b16 %v1418, %v1416
      %v1443 = vpack.c.b16 %v1419, %v1417
      %v1444 = vpack.c.b16 %v1422, %v1420
      %v1445 = vpack.c.b16 %v1423, %v1421
      %v1446 = vpack.c.b16 %v1426, %v1424
      %v1447 = vpack.c.b16 %v1427, %v1425
      %v1448 = vpack.c.b16 %v1430, %v1428
      %v1449 = vpack.c.b16 %v1431, %v1429
      %v1450 = vpack.c.b16 %v1434, %v1432
      %v1451 = vpack.c.b16 %v1435, %v1433
      %1468 = vmatprep.subr.bf16.mxu0 %v1451
      %1469 = vmatpush1.bf16.msra.mxu0 %v1450
      %1470 = vmatprep.subr.bf16.mxu0 %v1449
      %1471 = vmatpush1.bf16.msra.mxu0 %v1448
      %1472 = vmatprep.subr.bf16.mxu0 %v1447
      %1473 = vmatpush1.bf16.msra.mxu0 %v1446
      %1474 = vmatprep.subr.bf16.mxu0 %v1445
      %1475 = vmatpush1.bf16.msra.mxu0 %v1444
      %1476 = vmatprep.subr.bf16.mxu0 %v1443
      %1477 = vmatpush1.bf16.msra.mxu0 %v1442
      %1478 = vmatprep.subr.bf16.mxu0 %v1441
      %1479 = vmatpush1.bf16.msra.mxu0 %v1440
      %1480 = vmatprep.subr.bf16.mxu0 %v1439
      %1481 = vmatpush1.bf16.msra.mxu0 %v1438
      %1482 = vmatprep.subr.bf16.mxu0 %v1437
      %1483 = vmatpush1.bf16.msra.mxu0 %v1436
      %1484 = vmatprep.subr.bf16.mxu0 0
      %1485 = vmatpush2.bf16.msra.mxu0 0
      %1486 = vmatprep.subr.bf16.mxu0 0
      %1487 = vmatpush2.bf16.msra.mxu0 0
      %1488 = vmatprep.subr.bf16.mxu0 0
      %1489 = vmatpush2.bf16.msra.mxu0 0
      %1490 = vmatprep.subr.bf16.mxu0 0
      %1491 = vmatpush2.bf16.msra.mxu0 0
      %1492 = vmatprep.subr.bf16.mxu0 0
      %1493 = vmatpush2.bf16.msra.mxu0 0
      %1494 = vmatprep.subr.bf16.mxu0 0
      %1495 = vmatpush2.bf16.msra.mxu0 0
      %1496 = vmatprep.subr.bf16.mxu0 0
      %1497 = vmatpush2.bf16.msra.mxu0 0
      %1498 = vmatprep.subr.bf16.mxu0 0
      %1499 = vmatpush2.bf16.msra.mxu0 0
      %1500 = vmatprep.mubr.bf16.mxu0 0
      %1501 = vmatmul.mubr.bf16.gmra.mxu0 %v1229
      %v1502 = vpop.f32.mrf.mxu0
      %v1503 = vadd.f32 %v1380, %v1502
      %v1504 = vpop.f32.mrf.mxu0
      %v1505 = vadd.f32 %v1382, %v1504
      %v1506 = vpop.f32.mrf.mxu0
      %v1507 = vadd.f32 %v1384, %v1506
      %v1508 = vpop.f32.mrf.mxu0
      %v1509 = vadd.f32 %v1386, %v1508
      %1510 = vdwg.mxu0
      %s1511 = scalar_lea.vmem %s3, 4
      %v1512 = vld [vmem:[%s1511] sm:$0x3]
      %v1514 = vlaneseq
      %v1515 = vshrl.u32 %v1514, 7
      %v1516 = vsub.s32 0, %v1515
      %v1517 = vrot.slane %v1512, %v1516
      %v1518 = vlaneseq
      %v1519 = vshrl.u32 %v1518, 7
      %v1520 = vsub.s32 1, %v1519
      %v1521 = vrot.slane %v1512, %v1520
      %v1524 = vadd.f32 %v1503, %v1517
      %v1525 = vadd.f32 %v1505, %v1521
      %v1526 = vadd.f32 %v1507, %v1517
      %v1527 = vadd.f32 %v1509, %v1521
      %v1528 = vmul.f32 %v1524, %v263
      %v1529 = vmul.f32 %v1525, %v264
      %v1530 = vmul.f32 %v1526, %v263
      %v1531 = vmul.f32 %v1527, %v264
      %v1532 = vtanh.pop %v1528
      %v1533 = vtanh.pop %v1529
      %v1534 = vtanh.pop %v1530
      %v1535 = vtanh.pop %v1531
      %v1536 = vmul.f32 %v1533, 0.5
      %v1537 = vmul.f32 %v1535, 0.5
      %v1538 = vadd.f32 %v1536, 0.5
      %v1539 = vadd.f32 %v1537, 0.5
      %v1540 = vmul.f32 %v1532, %v1538
      %v1541 = vmul.f32 %v1534, %v1539
      %v1542 = vpack.c.bf16 %v1541, %v1540
      %s1543 = scalar_lea.vmem %s4, 256
      %v1544 = vld [vmem:[%s1543] sm:$0xff]
      %v1545 = vld [vmem:[%s1543 + $0x8] sm:$0xff]
      %v1546 = vld [vmem:[%s1543 + $0x10] sm:$0xff]
      %v1547 = vld [vmem:[%s1543 + $0x18] sm:$0xff]
      %v1548 = vld [vmem:[%s1543 + $0x20] sm:$0xff]
      %v1549 = vld [vmem:[%s1543 + $0x28] sm:$0xff]
      %v1550 = vld [vmem:[%s1543 + $0x30] sm:$0xff]
      %v1551 = vld [vmem:[%s1543 + $0x38] sm:$0xff]
      %v1552 = vld [vmem:[%s1543 + $0x40] sm:$0xff]
      %v1553 = vld [vmem:[%s1543 + $0x48] sm:$0xff]
      %v1554 = vld [vmem:[%s1543 + $0x50] sm:$0xff]
      %v1555 = vld [vmem:[%s1543 + $0x58] sm:$0xff]
      %v1556 = vld [vmem:[%s1543 + $0x60] sm:$0xff]
      %v1557 = vld [vmem:[%s1543 + $0x68] sm:$0xff]
      %v1558 = vld [vmem:[%s1543 + $0x70] sm:$0xff]
      %v1559 = vld [vmem:[%s1543 + $0x78] sm:$0xff]
      %s1560 = scalar_lea.vmem %s5, 4
      %v1561 = vld [vmem:[%s1560] sm:$0x3]
      %v1563 = vlaneseq
      %v1564 = vshrl.u32 %v1563, 7
      %v1565 = vsub.s32 0, %v1564
      %v1566 = vrot.slane %v1561, %v1565
      %v1584 = vunpack.c.l.b16 %v1544
      %v1585 = vunpack.c.h.b16 %v1544
      %v1586 = vunpack.c.l.b16 %v1545
      %v1587 = vunpack.c.h.b16 %v1545
      %v1588 = vunpack.c.l.b16 %v1546
      %v1589 = vunpack.c.h.b16 %v1546
      %v1590 = vunpack.c.l.b16 %v1547
      %v1591 = vunpack.c.h.b16 %v1547
      %v1592 = vunpack.c.l.b16 %v1548
      %v1593 = vunpack.c.h.b16 %v1548
      %v1594 = vunpack.c.l.b16 %v1549
      %v1595 = vunpack.c.h.b16 %v1549
      %v1596 = vunpack.c.l.b16 %v1550
      %v1597 = vunpack.c.h.b16 %v1550
      %v1598 = vunpack.c.l.b16 %v1551
      %v1599 = vunpack.c.h.b16 %v1551
      %v1600 = vunpack.c.l.b16 %v1552
      %v1601 = vunpack.c.h.b16 %v1552
      %v1602 = vunpack.c.l.b16 %v1553
      %v1603 = vunpack.c.h.b16 %v1553
      %v1604 = vunpack.c.l.b16 %v1554
      %v1605 = vunpack.c.h.b16 %v1554
      %v1606 = vunpack.c.l.b16 %v1555
      %v1607 = vunpack.c.h.b16 %v1555
      %v1608 = vunpack.c.l.b16 %v1556
      %v1609 = vunpack.c.h.b16 %v1556
      %v1610 = vunpack.c.l.b16 %v1557
      %v1611 = vunpack.c.h.b16 %v1557
      %v1612 = vunpack.c.l.b16 %v1558
      %v1613 = vunpack.c.h.b16 %v1558
      %v1614 = vunpack.c.l.b16 %v1559
      %v1615 = vunpack.c.h.b16 %v1559
      %v1616 = vpack.c.b16 %v1586, %v1584
      %v1617 = vpack.c.b16 %v1587, %v1585
      %v1618 = vpack.c.b16 %v1590, %v1588
      %v1619 = vpack.c.b16 %v1591, %v1589
      %v1620 = vpack.c.b16 %v1594, %v1592
      %v1621 = vpack.c.b16 %v1595, %v1593
      %v1622 = vpack.c.b16 %v1598, %v1596
      %v1623 = vpack.c.b16 %v1599, %v1597
      %v1624 = vpack.c.b16 %v1602, %v1600
      %v1625 = vpack.c.b16 %v1603, %v1601
      %v1626 = vpack.c.b16 %v1606, %v1604
      %v1627 = vpack.c.b16 %v1607, %v1605
      %v1628 = vpack.c.b16 %v1610, %v1608
      %v1629 = vpack.c.b16 %v1611, %v1609
      %v1630 = vpack.c.b16 %v1614, %v1612
      %v1631 = vpack.c.b16 %v1615, %v1613
      %1648 = vmatprep.subr.bf16.mxu0 %v1631
      %1649 = vmatpush1.bf16.msra.mxu0 %v1630
      %1650 = vmatprep.subr.bf16.mxu0 %v1629
      %1651 = vmatpush1.bf16.msra.mxu0 %v1628
      %1652 = vmatprep.subr.bf16.mxu0 %v1627
      %1653 = vmatpush1.bf16.msra.mxu0 %v1626
      %1654 = vmatprep.subr.bf16.mxu0 %v1625
      %1655 = vmatpush1.bf16.msra.mxu0 %v1624
      %1656 = vmatprep.subr.bf16.mxu0 %v1623
      %1657 = vmatpush1.bf16.msra.mxu0 %v1622
      %1658 = vmatprep.subr.bf16.mxu0 %v1621
      %1659 = vmatpush1.bf16.msra.mxu0 %v1620
      %1660 = vmatprep.subr.bf16.mxu0 %v1619
      %1661 = vmatpush1.bf16.msra.mxu0 %v1618
      %1662 = vmatprep.subr.bf16.mxu0 %v1617
      %1663 = vmatpush1.bf16.msra.mxu0 %v1616
      %1664 = vmatprep.subr.bf16.mxu0 0
      %1665 = vmatpush2.bf16.msra.mxu0 0
      %1666 = vmatprep.subr.bf16.mxu0 0
      %1667 = vmatpush2.bf16.msra.mxu0 0
      %1668 = vmatprep.subr.bf16.mxu0 0
      %1669 = vmatpush2.bf16.msra.mxu0 0
      %1670 = vmatprep.subr.bf16.mxu0 0
      %1671 = vmatpush2.bf16.msra.mxu0 0
      %1672 = vmatprep.subr.bf16.mxu0 0
      %1673 = vmatpush2.bf16.msra.mxu0 0
      %1674 = vmatprep.subr.bf16.mxu0 0
      %1675 = vmatpush2.bf16.msra.mxu0 0
      %1676 = vmatprep.subr.bf16.mxu0 0
      %1677 = vmatpush2.bf16.msra.mxu0 0
      %1678 = vmatprep.subr.bf16.mxu0 0
      %1679 = vmatpush2.bf16.msra.mxu0 0
      %1680 = vmatprep.mubr.bf16.mxu0 0
      %1681 = vmatmul.mubr.bf16.gmra.mxu0 %v1542
      %v1682 = vpop.f32.mrf.mxu0
      %v1683 = vadd.f32 %v1566, %v1682
      %v1684 = vpop.f32.mrf.mxu0
      %v1685 = vpop.f32.mrf.mxu0
      %v1686 = vadd.f32 %v1566, %v1685
      %v1687 = vpop.f32.mrf.mxu0
      %1688 = vdwg.mxu0
      %v1689 = vadd.f32 %v1216, %v1683
      %v1690 = vadd.f32 %v1217, %v1686
      %v1691 = vmax.f32 %v1689, 0.0
      %v1692 = vmax.f32 %v1690, 0.0
      %1693 = vst [vmem:[%s251] sm:$0xff] %v1691
      %1694 = vst [vmem:[%s251 + $0x8] sm:$0xff] %v1692
      %p1695 = scmp.lt.s32.totalorder %s17, 1
      %s1696 = scalar_select %p1695, %s17, 1
      %s1697 = smul.addr %s1696, 2
      %s1698 = smul.addr %s1697, 8
      %s1699 = scalar_lea.vmem %s6, %s1698
      // Predicated region
      $region45: #{wavenet_temporal.1} parent=43 // pred_check
        %p1700 = pneg %p166
      $region46: #{wavenet_temporal.1} parent=43 // pred_check_branch
        %1702 = sbr.rel (%p1700) target = $region48
      $region47: #{wavenet_temporal.1} parent=43 // pred_region
        _
      $region48: #{wavenet_temporal.1} parent=43 // pred_fallthru
        _
    $region44: #{wavenet_temporal.1} parent=5 // pred_fallthru
      _
    %p1703 = scmp.le.s32.totalorder 2, %s12
    // Predicated region
    $region49: #{wavenet_temporal.1} parent=5 // pred_check
      %p1704 = pneg %p1703
    $region50: #{wavenet_temporal.1} parent=5 // pred_check_branch
      %1706 = sbr.rel (%p1704) target = $region52
    $region51: #{wavenet_temporal.1} parent=5 // pred_region
      %s1707 = ssub.s32 %s12, 2
      // Predicated region
      $region53: #{wavenet_temporal.1} parent=51 // pred_check
        %p1708 = pneg %p172
      $region54: #{wavenet_temporal.1} parent=51 // pred_check_branch
        %1710 = sbr.rel (%p1708) target = $region56
      $region55: #{wavenet_temporal.1} parent=51 // pred_region
        %p1711 = scmp.lt.s32.totalorder %s18, 1
        %s1712 = scalar_select %p1711, %s18, 1
        %s1713 = smul.addr %s1712, 2
        %s1714 = smul.addr %s1713, 8
        %s1715 = scalar_lea.vmem %s6, %s1714
      $region56: #{wavenet_temporal.1} parent=51 // pred_fallthru
        _
    $region52: #{wavenet_temporal.1} parent=5 // pred_fallthru
      _
  $region6: #{wavenet_temporal.1} parent=0 // loop_footer
    %s16 = sadd.s32 1, %s12
  $region7: #{wavenet_temporal.1} parent=0 // loop_footer_branch
    %11 = sbr.rel target = $region3
  $region8: #{wavenet_temporal.1} parent=0 // loop_exit
    _

</llo_original>
